<compile_context>
chip_gen: v7x
topology: tpu7x:2x2x1
jax: 0.10.0
libtpu: 0.0.40
codegen_flags: <defaults>
</compile_context>

<pallas_src>
import functools

import jax
import jax.numpy as jnp
from jax.experimental import pallas as pl
from jax.experimental.pallas import tpu as pltpu

# ---------------- config (small but consistent with the module) ----------------
D_MODEL = 32
NUM_EXPERTS = 4
HEAD_DIM = max(1, D_MODEL // NUM_EXPERTS)      # 8; NUM_EXPERTS*HEAD_DIM == D_MODEL
BATCH = 2
SEQ = 8
SCALE = HEAD_DIM ** (-0.5)
LANES = 128                                    # pad fused projection to a full vreg

# fused-weight column offsets: [Q_all | K_all | V_all | router | pad]
Q_OFF = 0
K_OFF = NUM_EXPERTS * HEAD_DIM                 # 32
V_OFF = 2 * NUM_EXPERTS * HEAD_DIM             # 64
R_OFF = 3 * NUM_EXPERTS * HEAD_DIM             # 96


# ---------------- in-kernel helpers ----------------
def _softmax_last(x):
    m = jnp.max(x, axis=-1, keepdims=True)
    e = jnp.exp(x - m)
    # approx reciprocal -> EUP vrcp (separate bundle slot); error ~1e-4, well
    # inside the 1e-3 test tolerance.  Do NOT reuse for training / tight tolerances.
    return e * pl.reciprocal(jnp.sum(e, axis=-1, keepdims=True), approx=True)


# ---------------- the kernel ----------------
def moe_attention_kernel(x_ref, w_ref, b_ref, wo_ref, bo_ref, o_ref, *, batch, seq):
    x = x_ref[...]                                              # (B*S, D)

    # One fused, lane-dense projection: QKV for all experts + router logits.
    fused = (jnp.dot(x, w_ref[...], preferred_element_type=jnp.float32)
             + b_ref[...])                                      # (B*S, 128)

    # Router softmax over experts (logits live on the tail lanes of `fused`).
    routing = _softmax_last(fused[:, R_OFF:R_OFF + NUM_EXPERTS])       # (B*S, E)
    routing3 = routing.reshape(batch, seq, NUM_EXPERTS)                # (B, S, E)

    eo_parts = []
    for e in range(NUM_EXPERTS):                                # static unroll, E=4
        lo = e * HEAD_DIM
        hi = lo + HEAD_DIM
        q = fused[:, Q_OFF + lo:Q_OFF + hi].reshape(batch, seq, HEAD_DIM)
        k = fused[:, K_OFF + lo:K_OFF + hi].reshape(batch, seq, HEAD_DIM)
        v = fused[:, V_OFF + lo:V_OFF + hi].reshape(batch, seq, HEAD_DIM)

        # SCALE is folded into the Q columns of the fused weight/bias -> no *SCALE here.
        scores = jnp.einsum("bqh,bkh->bqk", q, k,
                            preferred_element_type=jnp.float32)        # (B, S, S)
        # TODO(synk): apply the optional attention `mask` here when provided.
        attn = _softmax_last(scores)
        eo = jnp.einsum("bqk,bkh->bqh", attn, v,
                        preferred_element_type=jnp.float32)            # (B, S, HD)
        eo_parts.append(eo * routing3[..., e:e + 1])                   # gate by routing

    # Experts tile d_model exactly (start_idx = e*HEAD_DIM), so the scatter-add of the
    # reference collapses to a single concatenate along the feature dim.
    combined = jnp.concatenate(eo_parts, axis=-1).reshape(batch * seq, D_MODEL)

    out = (jnp.dot(combined, wo_ref[...], preferred_element_type=jnp.float32)
           + bo_ref[...])                                       # (B*S, D)
    o_ref[...] = out.astype(o_ref.dtype)


# ---------------- one-time weight preparation (hoisted out of the hot path) ----------------
def prepare_params(p):
    """Build the fused, pre-transposed, pre-scaled, lane-padded weights. Call ONCE."""
    E, HD, D = NUM_EXPERTS, HEAD_DIM, D_MODEL
    we, be = p["we"], p["be"]                      # (E, 3*HD, D), (E, 3*HD)

    wq = we[:, 0:HD, :] * SCALE                    # fold attention scale into Q
    wk = we[:, HD:2 * HD, :]
    wv = we[:, 2 * HD:3 * HD, :]
    bq = be[:, 0:HD] * SCALE
    bk = be[:, HD:2 * HD]
    bv = be[:, 2 * HD:3 * HD]

    # Column order: [Q_e0..Q_e{E-1} | K_... | V_... | router] -> (D, 3*E*HD + E)
    w_cols = jnp.concatenate(
        [wq.reshape(E * HD, D), wk.reshape(E * HD, D), wv.reshape(E * HD, D), p["wr"]],
        axis=0).T                                                       # (D, 100)
    b_cols = jnp.concatenate(
        [bq.reshape(1, E * HD), bk.reshape(1, E * HD), bv.reshape(1, E * HD), p["br"]],
        axis=1)                                                         # (1, 100)

    pad = LANES - w_cols.shape[1]                  # zero-pad to 128 lanes (lane-dense)
    w_fused = jnp.pad(w_cols, ((0, 0), (0, pad)))
    b_fused = jnp.pad(b_cols, ((0, 0), (0, pad)))
    return dict(w_fused=w_fused, b_fused=b_fused, wo_t=p["wo"].T, bo=p["bo"])


# ---------------- wrapper (jitted; no per-call weight plumbing) ----------------
@jax.jit
def moe_attention(x, prepared):
    B, S, D = x.shape
    # Concat-based combine assumes experts exactly tile d_model.
    # TODO(synk): overlapping-expert case (NUM_EXPERTS*HEAD_DIM != D) not implemented.
    assert NUM_EXPERTS * HEAD_DIM == D

    x2 = x.reshape(B * S, D)                       # lane-dense rows

    kernel = functools.partial(moe_attention_kernel, batch=B, seq=S)
    vmem_spec = pl.BlockSpec(memory_space=pltpu.MemorySpace.VMEM)
    out = pl.pallas_call(
        kernel,
        out_shape=jax.ShapeDtypeStruct((B * S, D), jnp.float32),
        in_specs=[vmem_spec] * 5,
        out_specs=vmem_spec,
        compiler_params=pltpu.CompilerParams(vmem_limit_bytes=16 * 1024 * 1024),
        # Grid-less on purpose: whole ~25 KB problem lives in VMEM for one step.
    )(x2, prepared["w_fused"], prepared["b_fused"], prepared["wo_t"], prepared["bo"])
    return out.reshape(B, S, D)


# ---------------- deterministic parameter init (torch Linear layout) ----------------
def init_params(key):
    ks = jax.random.split(key, 4)

    def lin(k, out_f, in_f):
        kw, kb = jax.random.split(k)
        w = jax.random.normal(kw, (out_f, in_f), jnp.float32) * 0.1
        b = jax.random.normal(kb, (1, out_f), jnp.float32) * 0.1
        return w, b

    wr, br = lin(ks[0], NUM_EXPERTS, D_MODEL)                        # router
    we = jax.random.normal(ks[1], (NUM_EXPERTS, 3 * HEAD_DIM, D_MODEL),
                           jnp.float32) * 0.1                        # stacked experts
    be = jax.random.normal(ks[2], (NUM_EXPERTS, 3 * HEAD_DIM), jnp.float32) * 0.1
    wo, bo = lin(ks[3], D_MODEL, D_MODEL)                            # out_proj
    return dict(wr=wr, br=br, we=we, be=be, wo=wo, bo=bo)


# ---------------- pure-JAX reference (mirrors the PyTorch forward exactly) ----------------
def reference(x, p):
    routing = jax.nn.softmax(jnp.einsum("bsd,ed->bse", x, p["wr"]) + p["br"][0], axis=-1)
    B, S, D = x.shape
    combined = jnp.zeros((B, S, D), jnp.float32)
    for i in range(NUM_EXPERTS):
        qkv = jnp.einsum("bsd,hd->bsh", x, p["we"][i]) + p["be"][i]
        q = qkv[..., 0:HEAD_DIM]
        k = qkv[..., HEAD_DIM:2 * HEAD_DIM]
        v = qkv[..., 2 * HEAD_DIM:3 * HEAD_DIM]
        scores = jnp.einsum("bqh,bkh->bqk", q, k) * SCALE
        attn = jax.nn.softmax(scores, axis=-1)
        eo = jnp.einsum("bqk,bkh->bqh", attn, v) * routing[..., i:i + 1]
        start = min(i * HEAD_DIM, D_MODEL - HEAD_DIM)
        combined = combined.at[..., start:start + HEAD_DIM].add(eo)
    return jnp.einsum("bsd,od->bso", combined, p["wo"]) + p["bo"][0]


if __name__ == "__main__":
    key = jax.random.PRNGKey(0)
    kx, kp = jax.random.split(key)
    x = jax.random.normal(kx, (BATCH, SEQ, D_MODEL), jnp.float32)
    params = init_params(kp)
    prepared = prepare_params(params)          # one-time fusion/transpose, off the hot path

    out = moe_attention(x, prepared)
    out = jax.block_until_ready(out)

    ref = reference(x, params)
    assert out.shape == (BATCH, SEQ, D_MODEL)
    assert jnp.allclose(out, ref, atol=1e-3, rtol=1e-3), (
        f"max abs err = {float(jnp.max(jnp.abs(out - ref)))}")
    print("KERNEL_OK")
</pallas_src>

<mosaic_0001>
module attributes {stable_mosaic.version = 11 : i64} {
  func.func @moe_attention_kernel(%arg0: memref<16x32xf32, #tpu.memory_space<vmem>>, %arg1: memref<32x128xf32, #tpu.memory_space<vmem>>, %arg2: memref<1x128xf32, #tpu.memory_space<vmem>>, %arg3: memref<32x32xf32, #tpu.memory_space<vmem>>, %arg4: memref<1x32xf32, #tpu.memory_space<vmem>>, %arg5: memref<16x32xf32, #tpu.memory_space<vmem>>) attributes {dimension_semantics = [], scalar_prefetch = 0 : i64, scratch_operands = 0 : i64, tpu.core_type = #tpu.core_type<tc>} {
    %c0 = arith.constant 0 : index
    %c0_0 = arith.constant 0 : index
    %0 = vector.load %arg0[%c0, %c0_0] : memref<16x32xf32, #tpu.memory_space<vmem>>, vector<16x32xf32>
    %c0_1 = arith.constant 0 : index
    %c0_2 = arith.constant 0 : index
    %1 = vector.load %arg1[%c0_1, %c0_2] : memref<32x128xf32, #tpu.memory_space<vmem>>, vector<32x128xf32>
    %cst = arith.constant dense<0.000000e+00> : vector<16x128xf32>
    %2 = tpu.matmul %0, %1, %cst {dimension_numbers = #tpu.dot_dimension_numbers<[1], [0], [0], [1], [0, 0, 1, 1], [], []>} : vector<16x32xf32>, vector<32x128xf32>, vector<16x128xf32> -> vector<16x128xf32>
    %c0_3 = arith.constant 0 : index
    %c0_4 = arith.constant 0 : index
    %3 = vector.load %arg2[%c0_3, %c0_4] : memref<1x128xf32, #tpu.memory_space<vmem>>, vector<1x128xf32>
    %4 = vector.broadcast %3 : vector<1x128xf32> to vector<16x128xf32>
    %5 = arith.addf %2, %4 : vector<16x128xf32>
    %6 = vector.extract_strided_slice %5 {offsets = [0, 96], sizes = [16, 4], strides = [1, 1]} : vector<16x128xf32> to vector<16x4xf32>
    %cst_5 = arith.constant dense<0xFF800000> : vector<16xf32>
    %7 = vector.multi_reduction <maximumf>, %6, %cst_5 [1] : vector<16x4xf32> to vector<16xf32>
    %8 = vector.shape_cast %7 : vector<16xf32> to vector<16x1xf32>
    %9 = vector.broadcast %8 : vector<16x1xf32> to vector<16x4xf32>
    %10 = arith.subf %6, %9 : vector<16x4xf32>
    %11 = math.exp %10 : vector<16x4xf32>
    %cst_6 = arith.constant dense<0.000000e+00> : vector<16xf32>
    %12 = vector.multi_reduction <add>, %11, %cst_6 [1] : vector<16x4xf32> to vector<16xf32>
    %13 = vector.shape_cast %12 : vector<16xf32> to vector<16x1xf32>
    %14 = tpu.reciprocal %13 {approx = true} : vector<16x1xf32> -> vector<16x1xf32>
    %15 = vector.broadcast %14 : vector<16x1xf32> to vector<16x4xf32>
    %16 = arith.mulf %11, %15 : vector<16x4xf32>
    %17 = vector.shape_cast %16 : vector<16x4xf32> to vector<2x8x4xf32>
    %18 = vector.extract_strided_slice %5 {offsets = [0, 0], sizes = [16, 8], strides = [1, 1]} : vector<16x128xf32> to vector<16x8xf32>
    %19 = vector.shape_cast %18 : vector<16x8xf32> to vector<2x8x8xf32>
    %20 = vector.extract_strided_slice %5 {offsets = [0, 32], sizes = [16, 8], strides = [1, 1]} : vector<16x128xf32> to vector<16x8xf32>
    %21 = vector.shape_cast %20 : vector<16x8xf32> to vector<2x8x8xf32>
    %22 = vector.extract_strided_slice %5 {offsets = [0, 64], sizes = [16, 8], strides = [1, 1]} : vector<16x128xf32> to vector<16x8xf32>
    %23 = vector.shape_cast %22 : vector<16x8xf32> to vector<2x8x8xf32>
    "tpu.trace_start"() <{level = 10 : i32, message = "bqh,bkh->bqk"}> : () -> ()
    %cst_7 = arith.constant dense<0.000000e+00> : vector<2x8x8xf32>
    %24 = tpu.matmul %19, %21, %cst_7 {dimension_numbers = #tpu.dot_dimension_numbers<[2], [2], [1], [1], [0, 0, 0, 1, 1, 1], [0], [0]>} : vector<2x8x8xf32>, vector<2x8x8xf32>, vector<2x8x8xf32> -> vector<2x8x8xf32>
    "tpu.trace_stop"() : () -> ()
    %cst_8 = arith.constant dense<0xFF800000> : vector<2x8xf32>
    %25 = vector.multi_reduction <maximumf>, %24, %cst_8 [2] : vector<2x8x8xf32> to vector<2x8xf32>
    %26 = vector.shape_cast %25 : vector<2x8xf32> to vector<2x8x1xf32>
    %27 = vector.broadcast %26 : vector<2x8x1xf32> to vector<2x8x8xf32>
    %28 = arith.subf %24, %27 : vector<2x8x8xf32>
    %29 = math.exp %28 : vector<2x8x8xf32>
    %cst_9 = arith.constant dense<0.000000e+00> : vector<2x8xf32>
    %30 = vector.multi_reduction <add>, %29, %cst_9 [2] : vector<2x8x8xf32> to vector<2x8xf32>
    %31 = vector.shape_cast %30 : vector<2x8xf32> to vector<2x8x1xf32>
    %32 = tpu.reciprocal %31 {approx = true} : vector<2x8x1xf32> -> vector<2x8x1xf32>
    %33 = vector.broadcast %32 : vector<2x8x1xf32> to vector<2x8x8xf32>
    %34 = arith.mulf %29, %33 : vector<2x8x8xf32>
    "tpu.trace_start"() <{level = 10 : i32, message = "bqk,bkh->bqh"}> : () -> ()
    %cst_10 = arith.constant dense<0.000000e+00> : vector<2x8x8xf32>
    %35 = tpu.matmul %34, %23, %cst_10 {dimension_numbers = #tpu.dot_dimension_numbers<[2], [1], [1], [2], [0, 0, 0, 1, 1, 2], [0], [0]>} : vector<2x8x8xf32>, vector<2x8x8xf32>, vector<2x8x8xf32> -> vector<2x8x8xf32>
    "tpu.trace_stop"() : () -> ()
    %36 = vector.extract_strided_slice %17 {offsets = [0, 0, 0], sizes = [2, 8, 1], strides = [1, 1, 1]} : vector<2x8x4xf32> to vector<2x8x1xf32>
    %37 = vector.broadcast %36 : vector<2x8x1xf32> to vector<2x8x8xf32>
    %38 = arith.mulf %35, %37 : vector<2x8x8xf32>
    %39 = vector.extract_strided_slice %5 {offsets = [0, 8], sizes = [16, 8], strides = [1, 1]} : vector<16x128xf32> to vector<16x8xf32>
    %40 = vector.shape_cast %39 : vector<16x8xf32> to vector<2x8x8xf32>
    %41 = vector.extract_strided_slice %5 {offsets = [0, 40], sizes = [16, 8], strides = [1, 1]} : vector<16x128xf32> to vector<16x8xf32>
    %42 = vector.shape_cast %41 : vector<16x8xf32> to vector<2x8x8xf32>
    %43 = vector.extract_strided_slice %5 {offsets = [0, 72], sizes = [16, 8], strides = [1, 1]} : vector<16x128xf32> to vector<16x8xf32>
    %44 = vector.shape_cast %43 : vector<16x8xf32> to vector<2x8x8xf32>
    "tpu.trace_start"() <{level = 10 : i32, message = "bqh,bkh->bqk"}> : () -> ()
    %cst_11 = arith.constant dense<0.000000e+00> : vector<2x8x8xf32>
    %45 = tpu.matmul %40, %42, %cst_11 {dimension_numbers = #tpu.dot_dimension_numbers<[2], [2], [1], [1], [0, 0, 0, 1, 1, 1], [0], [0]>} : vector<2x8x8xf32>, vector<2x8x8xf32>, vector<2x8x8xf32> -> vector<2x8x8xf32>
    "tpu.trace_stop"() : () -> ()
    %cst_12 = arith.constant dense<0xFF800000> : vector<2x8xf32>
    %46 = vector.multi_reduction <maximumf>, %45, %cst_12 [2] : vector<2x8x8xf32> to vector<2x8xf32>
    %47 = vector.shape_cast %46 : vector<2x8xf32> to vector<2x8x1xf32>
    %48 = vector.broadcast %47 : vector<2x8x1xf32> to vector<2x8x8xf32>
    %49 = arith.subf %45, %48 : vector<2x8x8xf32>
    %50 = math.exp %49 : vector<2x8x8xf32>
    %cst_13 = arith.constant dense<0.000000e+00> : vector<2x8xf32>
    %51 = vector.multi_reduction <add>, %50, %cst_13 [2] : vector<2x8x8xf32> to vector<2x8xf32>
    %52 = vector.shape_cast %51 : vector<2x8xf32> to vector<2x8x1xf32>
    %53 = tpu.reciprocal %52 {approx = true} : vector<2x8x1xf32> -> vector<2x8x1xf32>
    %54 = vector.broadcast %53 : vector<2x8x1xf32> to vector<2x8x8xf32>
    %55 = arith.mulf %50, %54 : vector<2x8x8xf32>
    "tpu.trace_start"() <{level = 10 : i32, message = "bqk,bkh->bqh"}> : () -> ()
    %cst_14 = arith.constant dense<0.000000e+00> : vector<2x8x8xf32>
    %56 = tpu.matmul %55, %44, %cst_14 {dimension_numbers = #tpu.dot_dimension_numbers<[2], [1], [1], [2], [0, 0, 0, 1, 1, 2], [0], [0]>} : vector<2x8x8xf32>, vector<2x8x8xf32>, vector<2x8x8xf32> -> vector<2x8x8xf32>
    "tpu.trace_stop"() : () -> ()
    %57 = vector.extract_strided_slice %17 {offsets = [0, 0, 1], sizes = [2, 8, 1], strides = [1, 1, 1]} : vector<2x8x4xf32> to vector<2x8x1xf32>
    %58 = vector.broadcast %57 : vector<2x8x1xf32> to vector<2x8x8xf32>
    %59 = arith.mulf %56, %58 : vector<2x8x8xf32>
    %60 = vector.extract_strided_slice %5 {offsets = [0, 16], sizes = [16, 8], strides = [1, 1]} : vector<16x128xf32> to vector<16x8xf32>
    %61 = vector.shape_cast %60 : vector<16x8xf32> to vector<2x8x8xf32>
    %62 = vector.extract_strided_slice %5 {offsets = [0, 48], sizes = [16, 8], strides = [1, 1]} : vector<16x128xf32> to vector<16x8xf32>
    %63 = vector.shape_cast %62 : vector<16x8xf32> to vector<2x8x8xf32>
    %64 = vector.extract_strided_slice %5 {offsets = [0, 80], sizes = [16, 8], strides = [1, 1]} : vector<16x128xf32> to vector<16x8xf32>
    %65 = vector.shape_cast %64 : vector<16x8xf32> to vector<2x8x8xf32>
    "tpu.trace_start"() <{level = 10 : i32, message = "bqh,bkh->bqk"}> : () -> ()
    %cst_15 = arith.constant dense<0.000000e+00> : vector<2x8x8xf32>
    %66 = tpu.matmul %61, %63, %cst_15 {dimension_numbers = #tpu.dot_dimension_numbers<[2], [2], [1], [1], [0, 0, 0, 1, 1, 1], [0], [0]>} : vector<2x8x8xf32>, vector<2x8x8xf32>, vector<2x8x8xf32> -> vector<2x8x8xf32>
    "tpu.trace_stop"() : () -> ()
    %cst_16 = arith.constant dense<0xFF800000> : vector<2x8xf32>
    %67 = vector.multi_reduction <maximumf>, %66, %cst_16 [2] : vector<2x8x8xf32> to vector<2x8xf32>
    %68 = vector.shape_cast %67 : vector<2x8xf32> to vector<2x8x1xf32>
    %69 = vector.broadcast %68 : vector<2x8x1xf32> to vector<2x8x8xf32>
    %70 = arith.subf %66, %69 : vector<2x8x8xf32>
    %71 = math.exp %70 : vector<2x8x8xf32>
    %cst_17 = arith.constant dense<0.000000e+00> : vector<2x8xf32>
    %72 = vector.multi_reduction <add>, %71, %cst_17 [2] : vector<2x8x8xf32> to vector<2x8xf32>
    %73 = vector.shape_cast %72 : vector<2x8xf32> to vector<2x8x1xf32>
    %74 = tpu.reciprocal %73 {approx = true} : vector<2x8x1xf32> -> vector<2x8x1xf32>
    %75 = vector.broadcast %74 : vector<2x8x1xf32> to vector<2x8x8xf32>
    %76 = arith.mulf %71, %75 : vector<2x8x8xf32>
    "tpu.trace_start"() <{level = 10 : i32, message = "bqk,bkh->bqh"}> : () -> ()
    %cst_18 = arith.constant dense<0.000000e+00> : vector<2x8x8xf32>
    %77 = tpu.matmul %76, %65, %cst_18 {dimension_numbers = #tpu.dot_dimension_numbers<[2], [1], [1], [2], [0, 0, 0, 1, 1, 2], [0], [0]>} : vector<2x8x8xf32>, vector<2x8x8xf32>, vector<2x8x8xf32> -> vector<2x8x8xf32>
    "tpu.trace_stop"() : () -> ()
    %78 = vector.extract_strided_slice %17 {offsets = [0, 0, 2], sizes = [2, 8, 1], strides = [1, 1, 1]} : vector<2x8x4xf32> to vector<2x8x1xf32>
    %79 = vector.broadcast %78 : vector<2x8x1xf32> to vector<2x8x8xf32>
    %80 = arith.mulf %77, %79 : vector<2x8x8xf32>
    %81 = vector.extract_strided_slice %5 {offsets = [0, 24], sizes = [16, 8], strides = [1, 1]} : vector<16x128xf32> to vector<16x8xf32>
    %82 = vector.shape_cast %81 : vector<16x8xf32> to vector<2x8x8xf32>
    %83 = vector.extract_strided_slice %5 {offsets = [0, 56], sizes = [16, 8], strides = [1, 1]} : vector<16x128xf32> to vector<16x8xf32>
    %84 = vector.shape_cast %83 : vector<16x8xf32> to vector<2x8x8xf32>
    %85 = vector.extract_strided_slice %5 {offsets = [0, 88], sizes = [16, 8], strides = [1, 1]} : vector<16x128xf32> to vector<16x8xf32>
    %86 = vector.shape_cast %85 : vector<16x8xf32> to vector<2x8x8xf32>
    "tpu.trace_start"() <{level = 10 : i32, message = "bqh,bkh->bqk"}> : () -> ()
    %cst_19 = arith.constant dense<0.000000e+00> : vector<2x8x8xf32>
    %87 = tpu.matmul %82, %84, %cst_19 {dimension_numbers = #tpu.dot_dimension_numbers<[2], [2], [1], [1], [0, 0, 0, 1, 1, 1], [0], [0]>} : vector<2x8x8xf32>, vector<2x8x8xf32>, vector<2x8x8xf32> -> vector<2x8x8xf32>
    "tpu.trace_stop"() : () -> ()
    %cst_20 = arith.constant dense<0xFF800000> : vector<2x8xf32>
    %88 = vector.multi_reduction <maximumf>, %87, %cst_20 [2] : vector<2x8x8xf32> to vector<2x8xf32>
    %89 = vector.shape_cast %88 : vector<2x8xf32> to vector<2x8x1xf32>
    %90 = vector.broadcast %89 : vector<2x8x1xf32> to vector<2x8x8xf32>
    %91 = arith.subf %87, %90 : vector<2x8x8xf32>
    %92 = math.exp %91 : vector<2x8x8xf32>
    %cst_21 = arith.constant dense<0.000000e+00> : vector<2x8xf32>
    %93 = vector.multi_reduction <add>, %92, %cst_21 [2] : vector<2x8x8xf32> to vector<2x8xf32>
    %94 = vector.shape_cast %93 : vector<2x8xf32> to vector<2x8x1xf32>
    %95 = tpu.reciprocal %94 {approx = true} : vector<2x8x1xf32> -> vector<2x8x1xf32>
    %96 = vector.broadcast %95 : vector<2x8x1xf32> to vector<2x8x8xf32>
    %97 = arith.mulf %92, %96 : vector<2x8x8xf32>
    "tpu.trace_start"() <{level = 10 : i32, message = "bqk,bkh->bqh"}> : () -> ()
    %cst_22 = arith.constant dense<0.000000e+00> : vector<2x8x8xf32>
    %98 = tpu.matmul %97, %86, %cst_22 {dimension_numbers = #tpu.dot_dimension_numbers<[2], [1], [1], [2], [0, 0, 0, 1, 1, 2], [0], [0]>} : vector<2x8x8xf32>, vector<2x8x8xf32>, vector<2x8x8xf32> -> vector<2x8x8xf32>
    "tpu.trace_stop"() : () -> ()
    %99 = vector.extract_strided_slice %17 {offsets = [0, 0, 3], sizes = [2, 8, 1], strides = [1, 1, 1]} : vector<2x8x4xf32> to vector<2x8x1xf32>
    %100 = vector.broadcast %99 : vector<2x8x1xf32> to vector<2x8x8xf32>
    %101 = arith.mulf %98, %100 : vector<2x8x8xf32>
    %102 = tpu.concatenate %38, %59, %80, %101 in 2 : vector<2x8x8xf32>, vector<2x8x8xf32>, vector<2x8x8xf32>, vector<2x8x8xf32> -> vector<2x8x32xf32>
    %103 = vector.shape_cast %102 : vector<2x8x32xf32> to vector<16x32xf32>
    %c0_23 = arith.constant 0 : index
    %c0_24 = arith.constant 0 : index
    %104 = vector.load %arg3[%c0_23, %c0_24] : memref<32x32xf32, #tpu.memory_space<vmem>>, vector<32x32xf32>
    %cst_25 = arith.constant dense<0.000000e+00> : vector<16x32xf32>
    %105 = tpu.matmul %103, %104, %cst_25 {dimension_numbers = #tpu.dot_dimension_numbers<[1], [0], [0], [1], [0, 0, 1, 1], [], []>} : vector<16x32xf32>, vector<32x32xf32>, vector<16x32xf32> -> vector<16x32xf32>
    %c0_26 = arith.constant 0 : index
    %c0_27 = arith.constant 0 : index
    %106 = vector.load %arg4[%c0_26, %c0_27] : memref<1x32xf32, #tpu.memory_space<vmem>>, vector<1x32xf32>
    %107 = vector.broadcast %106 : vector<1x32xf32> to vector<16x32xf32>
    %108 = arith.addf %105, %107 : vector<16x32xf32>
    %c0_28 = arith.constant 0 : index
    %c0_29 = arith.constant 0 : index
    %109 = vector.load %arg5[%c0_28, %c0_29] : memref<16x32xf32, #tpu.memory_space<vmem>>, vector<16x32xf32>
    tpu.vector_store %arg5[%c0_28, %c0_29], %108 {strides = array<i32>} : memref<16x32xf32, #tpu.memory_space<vmem>>, vector<16x32xf32>,
    return
  }
}

</mosaic_0001>

<llo_original>
// kernel: moe_attention.1
$region0: #{moe_attention.1}
  #allocation0 [shape = 'u32[]', space=smem, size = 0x4, offset = 0x4, fixed_abs, tag = 'smem constant byte address 0x4 - core index']
  #allocation1 [shape = 'u32[144,128]{1,0:T(1,128)}', space=vmem, size = 0x12000, scoped, tag = 'internal scratch']
  %s0 = inlined_call_operand.hbm [shape: f32[16,32], index: 0, kind: input, shape index: {}]
  %s1 = inlined_call_operand.hbm [shape: f32[32,128], index: 1, kind: input, shape index: {}]
  %s2 = inlined_call_operand.vmem [shape: f32[1,128], index: 2, kind: input, shape index: {}]
  %s3 = inlined_call_operand.hbm [shape: f32[32,32], index: 3, kind: input, shape index: {}]
  %s4 = inlined_call_operand.vmem [shape: f32[1,32], index: 4, kind: input, shape index: {}]
  %s5 = inlined_call_operand.hbm [shape: f32[16,32], index: 5, kind: output, shape index: {}]
  %s6 = sld [smem:[#allocation0]]
  $region42: #{moe_attention.1} parent=0
    _
  %s8 = ssub.s32 1, %s6
  %s9 = scalar_select 0, %s8, %s6
  $region1: #{moe_attention.1} parent=0
    #allocation2 [shape = 'u8[8192]{0}', space=vmem, size = 0x2000, scoped, tag = 'input window, operand 0, single buffered']
    #allocation3 [shape = 's32[1]{0}', space=sflag, size = 0x4, scoped, tag = 'scoped memory for moe_attention.1']
    #allocation4 [shape = 's32[1]{0}', space=sflag, size = 0x4, scoped, tag = 'scoped memory for moe_attention.1']
    #allocation5 [shape = 'u8[16384]{0}', space=vmem, size = 0x4000, scoped, tag = 'input window, operand 1, single buffered']
    #allocation6 [shape = 's32[1]{0}', space=sflag, size = 0x4, scoped, tag = 'scoped memory for moe_attention.1']
    #allocation7 [shape = 'u8[16384]{0}', space=vmem, size = 0x4000, scoped, tag = 'input window, operand 3, single buffered']
    #allocation8 [shape = 'u8[8192]{0}', space=vmem, size = 0x2000, scoped, tag = 'output window, operand 0, single buffered']
    %10 = vsyncpa [#allocation3], 0
    %11 = vsyncpa [#allocation6], 0
    %12 = vsyncpa [#allocation4], 0
    // Predicated region
    $region2: #{moe_attention.1} parent=1 // pred_check
      _
    $region3: #{moe_attention.1} parent=1 // pred_check_branch
      %14 = sbr.rel (0) target = $region5
    $region4: #{moe_attention.1} parent=1 // pred_region
      %s16 = ssub.s32 256, 256
      %17 = vsyncadd [#allocation3], %s16
      %s18 = sshll.u32 [#allocation2], 4
      %s19 = int_to_ptr.vmem [resolvable:$true] %s18
      %24 = dma.hbm_to_vmem [thread:$0]  %s0, 256, %s19, [#allocation3], 128, 128, 8
    $region5: #{moe_attention.1} parent=1 // pred_fallthru
      _
    // Predicated region
    $region6: #{moe_attention.1} parent=1 // pred_check
      _
    $region7: #{moe_attention.1} parent=1 // pred_check_branch
      %26 = sbr.rel (0) target = $region9
    $region8: #{moe_attention.1} parent=1 // pred_region
      %s28 = ssub.s32 512, 512
      %29 = vsyncadd [#allocation6], %s28
      %s30 = sshll.u32 [#allocation5], 4
      %s31 = int_to_ptr.vmem [resolvable:$true] %s30
      %36 = dma.hbm_to_vmem [thread:$0]  %s1, 512, %s31, [#allocation6], 128, 128, 8
    $region9: #{moe_attention.1} parent=1 // pred_fallthru
      _
    // Predicated region
    $region10: #{moe_attention.1} parent=1 // pred_check
      _
    $region11: #{moe_attention.1} parent=1 // pred_check_branch
      %38 = sbr.rel (0) target = $region13
    $region12: #{moe_attention.1} parent=1 // pred_region
      _
    $region13: #{moe_attention.1} parent=1 // pred_fallthru
      _
    // Predicated region
    $region14: #{moe_attention.1} parent=1 // pred_check
      _
    $region15: #{moe_attention.1} parent=1 // pred_check_branch
      %40 = sbr.rel (0) target = $region17
    $region16: #{moe_attention.1} parent=1 // pred_region
      %s42 = ssub.s32 512, 512
      %43 = vsyncadd [#allocation6], %s42
      %s44 = sshll.u32 [#allocation7], 4
      %s45 = int_to_ptr.vmem [resolvable:$true] %s44
      %50 = dma.hbm_to_vmem [thread:$0]  %s3, 512, %s45, [#allocation6], 128, 128, 8
    $region17: #{moe_attention.1} parent=1 // pred_fallthru
      _
    // Predicated region
    $region18: #{moe_attention.1} parent=1 // pred_check
      _
    $region19: #{moe_attention.1} parent=1 // pred_check_branch
      %52 = sbr.rel (0) target = $region21
    $region20: #{moe_attention.1} parent=1 // pred_region
      _
    $region21: #{moe_attention.1} parent=1 // pred_fallthru
      _
    // Predicated region
    $region22: #{moe_attention.1} parent=1 // pred_check
      _
    $region23: #{moe_attention.1} parent=1 // pred_check_branch
      %54 = sbr.rel (0) target = $region25
    $region24: #{moe_attention.1} parent=1 // pred_region
      %55 = dma.done [#allocation3], 256
    $region25: #{moe_attention.1} parent=1 // pred_fallthru
      _
    // Predicated region
    $region26: #{moe_attention.1} parent=1 // pred_check
      _
    $region27: #{moe_attention.1} parent=1 // pred_check_branch
      %57 = sbr.rel (0) target = $region29
    $region28: #{moe_attention.1} parent=1 // pred_region
      %58 = dma.done [#allocation6], 512
    $region29: #{moe_attention.1} parent=1 // pred_fallthru
      _
    // Predicated region
    $region30: #{moe_attention.1} parent=1 // pred_check
      _
    $region31: #{moe_attention.1} parent=1 // pred_check_branch
      %60 = sbr.rel (0) target = $region33
    $region32: #{moe_attention.1} parent=1 // pred_region
      %61 = dma.done [#allocation6], 512
    $region33: #{moe_attention.1} parent=1 // pred_fallthru
      _
    %v62 = vld [vmem:[#allocation2] sm:$0xff]
    %v63 = vld [vmem:[#allocation2 + $0x8] sm:$0xff]
    %v64 = vld [vmem:[#allocation5] sm:$0xff]
    %v65 = vld [vmem:[#allocation5 + $0x8] sm:$0xff]
    %v66 = vld [vmem:[#allocation5 + $0x10] sm:$0xff]
    %v67 = vld [vmem:[#allocation5 + $0x18] sm:$0xff]
    %v68 = vld [vmem:[%s2] sm:$0x1]
    %v70 = vlaneseq
    %v71 = vshrl.u32 %v70, 7
    %v72 = vsub.s32 0, %v71
    %v73 = vrot.slane %v68, %v72
    %vm75 = vcmask 261120
    %v77 = vsel %vm75, %v62, 0
    %v80 = vsel %vm75, %v63, 0
    %82 = vmatprep.subr.mxu0 0.0
    %83 = vmatpush1.msra.mxu0 %v64
    %84 = vmatprep.subr.mxu0 0.0
    %85 = vmatpush1.msra.mxu0 %v65
    %86 = vmatprep.subr.mxu0 0.0
    %87 = vmatpush1.msra.mxu0 %v66
    %88 = vmatprep.subr.mxu0 0.0
    %89 = vmatpush1.msra.mxu0 %v67
    %90 = vmatprep.subr.mxu0 0.0
    %91 = vmatpush1.msra.mxu0 0.0
    %92 = vmatprep.subr.mxu0 0.0
    %93 = vmatpush1.msra.mxu0 0.0
    %94 = vmatprep.subr.mxu0 0.0
    %95 = vmatpush1.msra.mxu0 0.0
    %96 = vmatprep.subr.mxu0 0.0
    %97 = vmatpush1.msra.mxu0 0.0
    %98 = vmatprep.subr.mxu0 0.0
    %99 = vmatpush1.msra.mxu0 0.0
    %100 = vmatprep.subr.mxu0 0.0
    %101 = vmatpush1.msra.mxu0 0.0
    %102 = vmatprep.subr.mxu0 0.0
    %103 = vmatpush1.msra.mxu0 0.0
    %104 = vmatprep.subr.mxu0 0.0
    %105 = vmatpush1.msra.mxu0 0.0
    %106 = vmatprep.subr.mxu0 0.0
    %107 = vmatpush1.msra.mxu0 0.0
    %108 = vmatprep.subr.mxu0 0.0
    %109 = vmatpush1.msra.mxu0 0.0
    %110 = vmatprep.subr.mxu0 0.0
    %111 = vmatpush1.msra.mxu0 0.0
    %112 = vmatprep.subr.mxu0 0.0
    %113 = vmatpush1.msra.mxu0 0.0
    %114 = vmatprep.subr.mxu0 0.0
    %115 = vmatpush1.msra.mxu0 0.0
    %116 = vmatprep.subr.mxu0 0.0
    %117 = vmatpush1.msra.mxu0 0.0
    %118 = vmatprep.subr.mxu0 0.0
    %119 = vmatpush1.msra.mxu0 0.0
    %120 = vmatprep.subr.mxu0 0.0
    %121 = vmatpush1.msra.mxu0 0.0
    %122 = vmatprep.subr.mxu0 0.0
    %123 = vmatpush1.msra.mxu0 0.0
    %124 = vmatprep.subr.mxu0 0.0
    %125 = vmatpush1.msra.mxu0 0.0
    %126 = vmatprep.subr.mxu0 0.0
    %127 = vmatpush1.msra.mxu0 0.0
    %128 = vmatprep.subr.mxu0 0.0
    %129 = vmatpush1.msra.mxu0 0.0
    %130 = vmatprep.subr.mxu0 0.0
    %131 = vmatpush1.msra.mxu0 0.0
    %132 = vmatprep.subr.mxu0 0.0
    %133 = vmatpush1.msra.mxu0 0.0
    %134 = vmatprep.subr.mxu0 0.0
    %135 = vmatpush1.msra.mxu0 0.0
    %136 = vmatprep.subr.mxu0 0.0
    %137 = vmatpush1.msra.mxu0 0.0
    %138 = vmatprep.subr.mxu0 0.0
    %139 = vmatpush1.msra.mxu0 0.0
    %140 = vmatprep.subr.mxu0 0.0
    %141 = vmatpush1.msra.mxu0 0.0
    %142 = vmatprep.subr.mxu0 0.0
    %143 = vmatpush1.msra.mxu0 0.0
    %144 = vmatprep.subr.mxu0 0.0
    %145 = vmatpush1.msra.mxu0 0.0
    %146 = vmatprep.mubr.f32.mxu0 0.0
    %147 = vmatmul.mubr.f32.gmra.mrb[0].mxu0 %v77
    %v148 = vpop.f32.mrb[0].mxu0
    %v149 = vadd.f32 %v73, %v148
    %v150 = vpop.f32.mrb[0].mxu0
    %151 = vmatprep.mubr.f32.mxu0 0.0
    %152 = vmatmul.mubr.f32.gmra.mrb[0].mxu0 %v80
    %v153 = vpop.f32.mrb[0].mxu0
    %v154 = vadd.f32 %v73, %v153
    %v155 = vpop.f32.mrb[0].mxu0
    %156 = vdwg.mxu0
    %vm157 = vcmask 818944
    %v158 = vsel %vm157, %v149, -inf
    %159 = vmax.xlane.f32.xlu0 %v158
    %v160 = vpop.xlane.xlu0 %159
    %v161 = vsel %vm157, %v154, -inf
    %162 = vmax.xlane.f32.xlu0 %v161
    %v163 = vpop.xlane.xlu0 %162
    %v164 = vsub.f32 %v149, %v160
    %v165 = vsub.f32 %v154, %v163
    %v166 = vmul.f32 %v164, 1.442695
    %v167 = vpow.pop %v166
    %v168 = vmul.f32 %v165, 1.442695
    %v169 = vpow.pop %v168
    %172 = vrot.lane.b32.xlu0 %v167, 32
    %v173 = vpop.permute.xlu0 %172
    %174 = vrot.lane.b32.xlu0 %v169, 32
    %v175 = vpop.permute.xlu0 %174
    %vm178 = vcmask 31744
    %v179 = vsel %vm178, %v173, 0.0
    %180 = vadd.xlane.f32.xlu0 %v179
    %v181 = vpop.xlane.xlu0 %180
    %v182 = vsel %vm178, %v175, 0.0
    %183 = vadd.xlane.f32.xlu0 %v182
    %v184 = vpop.xlane.xlu0 %183
    %v185 = vrcp.pop %v181
    %v186 = vrcp.pop %v184
    %v187 = vmul.f32 %v167, %v185
    %v188 = vmul.f32 %v169, %v186
    %190 = vrot.lane.b32.xlu0 %v149, 96
    %v191 = vpop.permute.xlu0 %190
    %vm192 = vcmask 64512
    %v193 = vsel %vm192, %v149, 0
    %v195 = vsel %vm192, %v191, 0
    %197 = vmatprep.subr.mxu0 0.0
    %198 = vmatpush1.xpose.msra.mxu0 %v195
    %199 = vmatprep.subr.mxu0 0.0
    %200 = vmatpush1.xpose.msra.mxu0 0.0
    %201 = vmatprep.subr.mxu0 0.0
    %202 = vmatpush1.xpose.msra.mxu0 0.0
    %203 = vmatprep.subr.mxu0 0.0
    %204 = vmatpush1.xpose.msra.mxu0 0.0
    %205 = vmatprep.subr.mxu0 0.0
    %206 = vmatpush1.xpose.msra.mxu0 0.0
    %207 = vmatprep.subr.mxu0 0.0
    %208 = vmatpush1.xpose.msra.mxu0 0.0
    %209 = vmatprep.subr.mxu0 0.0
    %210 = vmatpush1.xpose.msra.mxu0 0.0
    %211 = vmatprep.subr.mxu0 0.0
    %212 = vmatpush1.xpose.msra.mxu0 0.0
    %213 = vmatprep.subr.mxu0 0.0
    %214 = vmatpush1.xpose.msra.mxu0 0.0
    %215 = vmatprep.subr.mxu0 0.0
    %216 = vmatpush1.xpose.msra.mxu0 0.0
    %217 = vmatprep.subr.mxu0 0.0
    %218 = vmatpush1.xpose.msra.mxu0 0.0
    %219 = vmatprep.subr.mxu0 0.0
    %220 = vmatpush1.xpose.msra.mxu0 0.0
    %221 = vmatprep.subr.mxu0 0.0
    %222 = vmatpush1.xpose.msra.mxu0 0.0
    %223 = vmatprep.subr.mxu0 0.0
    %224 = vmatpush1.xpose.msra.mxu0 0.0
    %225 = vmatprep.subr.mxu0 0.0
    %226 = vmatpush1.xpose.msra.mxu0 0.0
    %227 = vmatprep.subr.mxu0 0.0
    %228 = vmatpush1.xpose.msra.mxu0 0.0
    %229 = vmatprep.subr.mxu0 0.0
    %230 = vmatpush1.xpose.msra.mxu0 0.0
    %231 = vmatprep.subr.mxu0 0.0
    %232 = vmatpush1.xpose.msra.mxu0 0.0
    %233 = vmatprep.subr.mxu0 0.0
    %234 = vmatpush1.xpose.msra.mxu0 0.0
    %235 = vmatprep.subr.mxu0 0.0
    %236 = vmatpush1.xpose.msra.mxu0 0.0
    %237 = vmatprep.subr.mxu0 0.0
    %238 = vmatpush1.xpose.msra.mxu0 0.0
    %239 = vmatprep.subr.mxu0 0.0
    %240 = vmatpush1.xpose.msra.mxu0 0.0
    %241 = vmatprep.subr.mxu0 0.0
    %242 = vmatpush1.xpose.msra.mxu0 0.0
    %243 = vmatprep.subr.mxu0 0.0
    %244 = vmatpush1.xpose.msra.mxu0 0.0
    %245 = vmatprep.subr.mxu0 0.0
    %246 = vmatpush1.xpose.msra.mxu0 0.0
    %247 = vmatprep.subr.mxu0 0.0
    %248 = vmatpush1.xpose.msra.mxu0 0.0
    %249 = vmatprep.subr.mxu0 0.0
    %250 = vmatpush1.xpose.msra.mxu0 0.0
    %251 = vmatprep.subr.mxu0 0.0
    %252 = vmatpush1.xpose.msra.mxu0 0.0
    %253 = vmatprep.subr.mxu0 0.0
    %254 = vmatpush1.xpose.msra.mxu0 0.0
    %255 = vmatprep.subr.mxu0 0.0
    %256 = vmatpush1.xpose.msra.mxu0 0.0
    %257 = vmatprep.subr.mxu0 0.0
    %258 = vmatpush1.xpose.msra.mxu0 0.0
    %259 = vmatprep.subr.mxu0 0.0
    %260 = vmatpush1.xpose.msra.mxu0 0.0
    %261 = vmatprep.mubr.f32.mxu0 0.0
    %262 = vmatmul.mubr.f32.gmra.mrb[0].mxu0 %v193
    %v263 = vpop.f32.mrb[0].mxu0
    %v264 = vadd.f32 0.0, %v263
    %v265 = vpop.f32.mrb[0].mxu0
    %266 = vdwg.mxu0
    %268 = vrot.lane.b32.xlu0 %v154, 96
    %v269 = vpop.permute.xlu0 %268
    %v270 = vsel %vm192, %v154, 0
    %v272 = vsel %vm192, %v269, 0
    %274 = vmatprep.subr.mxu0 0.0
    %275 = vmatpush1.xpose.msra.mxu0 %v272
    %276 = vmatprep.subr.mxu0 0.0
    %277 = vmatpush1.xpose.msra.mxu0 0.0
    %278 = vmatprep.subr.mxu0 0.0
    %279 = vmatpush1.xpose.msra.mxu0 0.0
    %280 = vmatprep.subr.mxu0 0.0
    %281 = vmatpush1.xpose.msra.mxu0 0.0
    %282 = vmatprep.subr.mxu0 0.0
    %283 = vmatpush1.xpose.msra.mxu0 0.0
    %284 = vmatprep.subr.mxu0 0.0
    %285 = vmatpush1.xpose.msra.mxu0 0.0
    %286 = vmatprep.subr.mxu0 0.0
    %287 = vmatpush1.xpose.msra.mxu0 0.0
    %288 = vmatprep.subr.mxu0 0.0
    %289 = vmatpush1.xpose.msra.mxu0 0.0
    %290 = vmatprep.subr.mxu0 0.0
    %291 = vmatpush1.xpose.msra.mxu0 0.0
    %292 = vmatprep.subr.mxu0 0.0
    %293 = vmatpush1.xpose.msra.mxu0 0.0
    %294 = vmatprep.subr.mxu0 0.0
    %295 = vmatpush1.xpose.msra.mxu0 0.0
    %296 = vmatprep.subr.mxu0 0.0
    %297 = vmatpush1.xpose.msra.mxu0 0.0
    %298 = vmatprep.subr.mxu0 0.0
    %299 = vmatpush1.xpose.msra.mxu0 0.0
    %300 = vmatprep.subr.mxu0 0.0
    %301 = vmatpush1.xpose.msra.mxu0 0.0
    %302 = vmatprep.subr.mxu0 0.0
    %303 = vmatpush1.xpose.msra.mxu0 0.0
    %304 = vmatprep.subr.mxu0 0.0
    %305 = vmatpush1.xpose.msra.mxu0 0.0
    %306 = vmatprep.subr.mxu0 0.0
    %307 = vmatpush1.xpose.msra.mxu0 0.0
    %308 = vmatprep.subr.mxu0 0.0
    %309 = vmatpush1.xpose.msra.mxu0 0.0
    %310 = vmatprep.subr.mxu0 0.0
    %311 = vmatpush1.xpose.msra.mxu0 0.0
    %312 = vmatprep.subr.mxu0 0.0
    %313 = vmatpush1.xpose.msra.mxu0 0.0
    %314 = vmatprep.subr.mxu0 0.0
    %315 = vmatpush1.xpose.msra.mxu0 0.0
    %316 = vmatprep.subr.mxu0 0.0
    %317 = vmatpush1.xpose.msra.mxu0 0.0
    %318 = vmatprep.subr.mxu0 0.0
    %319 = vmatpush1.xpose.msra.mxu0 0.0
    %320 = vmatprep.subr.mxu0 0.0
    %321 = vmatpush1.xpose.msra.mxu0 0.0
    %322 = vmatprep.subr.mxu0 0.0
    %323 = vmatpush1.xpose.msra.mxu0 0.0
    %324 = vmatprep.subr.mxu0 0.0
    %325 = vmatpush1.xpose.msra.mxu0 0.0
    %326 = vmatprep.subr.mxu0 0.0
    %327 = vmatpush1.xpose.msra.mxu0 0.0
    %328 = vmatprep.subr.mxu0 0.0
    %329 = vmatpush1.xpose.msra.mxu0 0.0
    %330 = vmatprep.subr.mxu0 0.0
    %331 = vmatpush1.xpose.msra.mxu0 0.0
    %332 = vmatprep.subr.mxu0 0.0
    %333 = vmatpush1.xpose.msra.mxu0 0.0
    %334 = vmatprep.subr.mxu0 0.0
    %335 = vmatpush1.xpose.msra.mxu0 0.0
    %336 = vmatprep.subr.mxu0 0.0
    %337 = vmatpush1.xpose.msra.mxu0 0.0
    %338 = vmatprep.mubr.f32.mxu0 0.0
    %339 = vmatmul.mubr.f32.gmra.mrb[0].mxu0 %v270
    %v340 = vpop.f32.mrb[0].mxu0
    %v341 = vadd.f32 0.0, %v340
    %v342 = vpop.f32.mrb[0].mxu0
    %343 = vdwg.mxu0
    %v344 = vsel %vm192, %v264, -inf
    %345 = vmax.xlane.f32.xlu0 %v344
    %v346 = vpop.xlane.xlu0 %345
    %v347 = vsel %vm192, %v341, -inf
    %348 = vmax.xlane.f32.xlu0 %v347
    %v349 = vpop.xlane.xlu0 %348
    %v350 = vsub.f32 %v264, %v346
    %v351 = vsub.f32 %v341, %v349
    %v352 = vmul.f32 %v350, 1.442695
    %v353 = vpow.pop %v352
    %v354 = vmul.f32 %v351, 1.442695
    %v355 = vpow.pop %v354
    %v356 = vsel %vm192, %v353, 0.0
    %357 = vadd.xlane.f32.xlu0 %v356
    %v358 = vpop.xlane.xlu0 %357
    %v359 = vsel %vm192, %v355, 0.0
    %360 = vadd.xlane.f32.xlu0 %v359
    %v361 = vpop.xlane.xlu0 %360
    %v362 = vrcp.pop %v358
    %v363 = vrcp.pop %v361
    %v364 = vmul.f32 %v353, %v362
    %v365 = vmul.f32 %v355, %v363
    %366 = vrot.lane.b32.xlu0 %v149, 64
    %v367 = vpop.permute.xlu0 %366
    %v370 = vsel %vm192, %v364, 0
    %372 = vmatprep.subr.mxu0 0.0
    %373 = vmatpush1.msra.mxu0 %v367
    %374 = vmatprep.subr.mxu0 0.0
    %375 = vmatpush1.msra.mxu0 0.0
    %376 = vmatprep.subr.mxu0 0.0
    %377 = vmatpush1.msra.mxu0 0.0
    %378 = vmatprep.subr.mxu0 0.0
    %379 = vmatpush1.msra.mxu0 0.0
    %380 = vmatprep.subr.mxu0 0.0
    %381 = vmatpush1.msra.mxu0 0.0
    %382 = vmatprep.subr.mxu0 0.0
    %383 = vmatpush1.msra.mxu0 0.0
    %384 = vmatprep.subr.mxu0 0.0
    %385 = vmatpush1.msra.mxu0 0.0
    %386 = vmatprep.subr.mxu0 0.0
    %387 = vmatpush1.msra.mxu0 0.0
    %388 = vmatprep.subr.mxu0 0.0
    %389 = vmatpush1.msra.mxu0 0.0
    %390 = vmatprep.subr.mxu0 0.0
    %391 = vmatpush1.msra.mxu0 0.0
    %392 = vmatprep.subr.mxu0 0.0
    %393 = vmatpush1.msra.mxu0 0.0
    %394 = vmatprep.subr.mxu0 0.0
    %395 = vmatpush1.msra.mxu0 0.0
    %396 = vmatprep.subr.mxu0 0.0
    %397 = vmatpush1.msra.mxu0 0.0
    %398 = vmatprep.subr.mxu0 0.0
    %399 = vmatpush1.msra.mxu0 0.0
    %400 = vmatprep.subr.mxu0 0.0
    %401 = vmatpush1.msra.mxu0 0.0
    %402 = vmatprep.subr.mxu0 0.0
    %403 = vmatpush1.msra.mxu0 0.0
    %404 = vmatprep.subr.mxu0 0.0
    %405 = vmatpush1.msra.mxu0 0.0
    %406 = vmatprep.subr.mxu0 0.0
    %407 = vmatpush1.msra.mxu0 0.0
    %408 = vmatprep.subr.mxu0 0.0
    %409 = vmatpush1.msra.mxu0 0.0
    %410 = vmatprep.subr.mxu0 0.0
    %411 = vmatpush1.msra.mxu0 0.0
    %412 = vmatprep.subr.mxu0 0.0
    %413 = vmatpush1.msra.mxu0 0.0
    %414 = vmatprep.subr.mxu0 0.0
    %415 = vmatpush1.msra.mxu0 0.0
    %416 = vmatprep.subr.mxu0 0.0
    %417 = vmatpush1.msra.mxu0 0.0
    %418 = vmatprep.subr.mxu0 0.0
    %419 = vmatpush1.msra.mxu0 0.0
    %420 = vmatprep.subr.mxu0 0.0
    %421 = vmatpush1.msra.mxu0 0.0
    %422 = vmatprep.subr.mxu0 0.0
    %423 = vmatpush1.msra.mxu0 0.0
    %424 = vmatprep.subr.mxu0 0.0
    %425 = vmatpush1.msra.mxu0 0.0
    %426 = vmatprep.subr.mxu0 0.0
    %427 = vmatpush1.msra.mxu0 0.0
    %428 = vmatprep.subr.mxu0 0.0
    %429 = vmatpush1.msra.mxu0 0.0
    %430 = vmatprep.subr.mxu0 0.0
    %431 = vmatpush1.msra.mxu0 0.0
    %432 = vmatprep.subr.mxu0 0.0
    %433 = vmatpush1.msra.mxu0 0.0
    %434 = vmatprep.subr.mxu0 0.0
    %435 = vmatpush1.msra.mxu0 0.0
    %436 = vmatprep.mubr.f32.mxu0 0.0
    %437 = vmatmul.mubr.f32.gmra.mrb[0].mxu0 %v370
    %v438 = vpop.f32.mrb[0].mxu0
    %v439 = vadd.f32 0.0, %v438
    %v440 = vpop.f32.mrb[0].mxu0
    %441 = vdwg.mxu0
    %442 = vrot.lane.b32.xlu0 %v154, 64
    %v443 = vpop.permute.xlu0 %442
    %v446 = vsel %vm192, %v365, 0
    %448 = vmatprep.subr.mxu0 0.0
    %449 = vmatpush1.msra.mxu0 %v443
    %450 = vmatprep.subr.mxu0 0.0
    %451 = vmatpush1.msra.mxu0 0.0
    %452 = vmatprep.subr.mxu0 0.0
    %453 = vmatpush1.msra.mxu0 0.0
    %454 = vmatprep.subr.mxu0 0.0
    %455 = vmatpush1.msra.mxu0 0.0
    %456 = vmatprep.subr.mxu0 0.0
    %457 = vmatpush1.msra.mxu0 0.0
    %458 = vmatprep.subr.mxu0 0.0
    %459 = vmatpush1.msra.mxu0 0.0
    %460 = vmatprep.subr.mxu0 0.0
    %461 = vmatpush1.msra.mxu0 0.0
    %462 = vmatprep.subr.mxu0 0.0
    %463 = vmatpush1.msra.mxu0 0.0
    %464 = vmatprep.subr.mxu0 0.0
    %465 = vmatpush1.msra.mxu0 0.0
    %466 = vmatprep.subr.mxu0 0.0
    %467 = vmatpush1.msra.mxu0 0.0
    %468 = vmatprep.subr.mxu0 0.0
    %469 = vmatpush1.msra.mxu0 0.0
    %470 = vmatprep.subr.mxu0 0.0
    %471 = vmatpush1.msra.mxu0 0.0
    %472 = vmatprep.subr.mxu0 0.0
    %473 = vmatpush1.msra.mxu0 0.0
    %474 = vmatprep.subr.mxu0 0.0
    %475 = vmatpush1.msra.mxu0 0.0
    %476 = vmatprep.subr.mxu0 0.0
    %477 = vmatpush1.msra.mxu0 0.0
    %478 = vmatprep.subr.mxu0 0.0
    %479 = vmatpush1.msra.mxu0 0.0
    %480 = vmatprep.subr.mxu0 0.0
    %481 = vmatpush1.msra.mxu0 0.0
    %482 = vmatprep.subr.mxu0 0.0
    %483 = vmatpush1.msra.mxu0 0.0
    %484 = vmatprep.subr.mxu0 0.0
    %485 = vmatpush1.msra.mxu0 0.0
    %486 = vmatprep.subr.mxu0 0.0
    %487 = vmatpush1.msra.mxu0 0.0
    %488 = vmatprep.subr.mxu0 0.0
    %489 = vmatpush1.msra.mxu0 0.0
    %490 = vmatprep.subr.mxu0 0.0
    %491 = vmatpush1.msra.mxu0 0.0
    %492 = vmatprep.subr.mxu0 0.0
    %493 = vmatpush1.msra.mxu0 0.0
    %494 = vmatprep.subr.mxu0 0.0
    %495 = vmatpush1.msra.mxu0 0.0
    %496 = vmatprep.subr.mxu0 0.0
    %497 = vmatpush1.msra.mxu0 0.0
    %498 = vmatprep.subr.mxu0 0.0
    %499 = vmatpush1.msra.mxu0 0.0
    %500 = vmatprep.subr.mxu0 0.0
    %501 = vmatpush1.msra.mxu0 0.0
    %502 = vmatprep.subr.mxu0 0.0
    %503 = vmatpush1.msra.mxu0 0.0
    %504 = vmatprep.subr.mxu0 0.0
    %505 = vmatpush1.msra.mxu0 0.0
    %506 = vmatprep.subr.mxu0 0.0
    %507 = vmatpush1.msra.mxu0 0.0
    %508 = vmatprep.subr.mxu0 0.0
    %509 = vmatpush1.msra.mxu0 0.0
    %510 = vmatprep.subr.mxu0 0.0
    %511 = vmatpush1.msra.mxu0 0.0
    %512 = vmatprep.mubr.f32.mxu0 0.0
    %513 = vmatmul.mubr.f32.gmra.mrb[0].mxu0 %v446
    %v514 = vpop.f32.mrb[0].mxu0
    %v515 = vadd.f32 0.0, %v514
    %v516 = vpop.f32.mrb[0].mxu0
    %517 = vdwg.mxu0
    %519 = vset.pattern.permute.xlu0 96
    %520 = vperm.xlu0 %519, %v187
    %v521 = vpop.permute.xlu0 %520
    %524 = vset.pattern.permute.xlu0 96
    %525 = vperm.xlu0 %524, %v188
    %v526 = vpop.permute.xlu0 %525
    %v528 = vmul.f32 %v439, %v521
    %v529 = vmul.f32 %v515, %v526
    %530 = vrot.lane.b32.xlu0 %v149, 120
    %v531 = vpop.permute.xlu0 %530
    %532 = vrot.lane.b32.xlu0 %v149, 88
    %v533 = vpop.permute.xlu0 %532
    %v534 = vsel %vm192, %v531, 0
    %v536 = vsel %vm192, %v533, 0
    %538 = vmatprep.subr.mxu0 0.0
    %539 = vmatpush1.xpose.msra.mxu0 %v536
    %540 = vmatprep.subr.mxu0 0.0
    %541 = vmatpush1.xpose.msra.mxu0 0.0
    %542 = vmatprep.subr.mxu0 0.0
    %543 = vmatpush1.xpose.msra.mxu0 0.0
    %544 = vmatprep.subr.mxu0 0.0
    %545 = vmatpush1.xpose.msra.mxu0 0.0
    %546 = vmatprep.subr.mxu0 0.0
    %547 = vmatpush1.xpose.msra.mxu0 0.0
    %548 = vmatprep.subr.mxu0 0.0
    %549 = vmatpush1.xpose.msra.mxu0 0.0
    %550 = vmatprep.subr.mxu0 0.0
    %551 = vmatpush1.xpose.msra.mxu0 0.0
    %552 = vmatprep.subr.mxu0 0.0
    %553 = vmatpush1.xpose.msra.mxu0 0.0
    %554 = vmatprep.subr.mxu0 0.0
    %555 = vmatpush1.xpose.msra.mxu0 0.0
    %556 = vmatprep.subr.mxu0 0.0
    %557 = vmatpush1.xpose.msra.mxu0 0.0
    %558 = vmatprep.subr.mxu0 0.0
    %559 = vmatpush1.xpose.msra.mxu0 0.0
    %560 = vmatprep.subr.mxu0 0.0
    %561 = vmatpush1.xpose.msra.mxu0 0.0
    %562 = vmatprep.subr.mxu0 0.0
    %563 = vmatpush1.xpose.msra.mxu0 0.0
    %564 = vmatprep.subr.mxu0 0.0
    %565 = vmatpush1.xpose.msra.mxu0 0.0
    %566 = vmatprep.subr.mxu0 0.0
    %567 = vmatpush1.xpose.msra.mxu0 0.0
    %568 = vmatprep.subr.mxu0 0.0
    %569 = vmatpush1.xpose.msra.mxu0 0.0
    %570 = vmatprep.subr.mxu0 0.0
    %571 = vmatpush1.xpose.msra.mxu0 0.0
    %572 = vmatprep.subr.mxu0 0.0
    %573 = vmatpush1.xpose.msra.mxu0 0.0
    %574 = vmatprep.subr.mxu0 0.0
    %575 = vmatpush1.xpose.msra.mxu0 0.0
    %576 = vmatprep.subr.mxu0 0.0
    %577 = vmatpush1.xpose.msra.mxu0 0.0
    %578 = vmatprep.subr.mxu0 0.0
    %579 = vmatpush1.xpose.msra.mxu0 0.0
    %580 = vmatprep.subr.mxu0 0.0
    %581 = vmatpush1.xpose.msra.mxu0 0.0
    %582 = vmatprep.subr.mxu0 0.0
    %583 = vmatpush1.xpose.msra.mxu0 0.0
    %584 = vmatprep.subr.mxu0 0.0
    %585 = vmatpush1.xpose.msra.mxu0 0.0
    %586 = vmatprep.subr.mxu0 0.0
    %587 = vmatpush1.xpose.msra.mxu0 0.0
    %588 = vmatprep.subr.mxu0 0.0
    %589 = vmatpush1.xpose.msra.mxu0 0.0
    %590 = vmatprep.subr.mxu0 0.0
    %591 = vmatpush1.xpose.msra.mxu0 0.0
    %592 = vmatprep.subr.mxu0 0.0
    %593 = vmatpush1.xpose.msra.mxu0 0.0
    %594 = vmatprep.subr.mxu0 0.0
    %595 = vmatpush1.xpose.msra.mxu0 0.0
    %596 = vmatprep.subr.mxu0 0.0
    %597 = vmatpush1.xpose.msra.mxu0 0.0
    %598 = vmatprep.subr.mxu0 0.0
    %599 = vmatpush1.xpose.msra.mxu0 0.0
    %600 = vmatprep.subr.mxu0 0.0
    %601 = vmatpush1.xpose.msra.mxu0 0.0
    %602 = vmatprep.mubr.f32.mxu0 0.0
    %603 = vmatmul.mubr.f32.gmra.mrb[0].mxu0 %v534
    %v604 = vpop.f32.mrb[0].mxu0
    %v605 = vadd.f32 0.0, %v604
    %v606 = vpop.f32.mrb[0].mxu0
    %607 = vdwg.mxu0
    %608 = vrot.lane.b32.xlu0 %v154, 120
    %v609 = vpop.permute.xlu0 %608
    %610 = vrot.lane.b32.xlu0 %v154, 88
    %v611 = vpop.permute.xlu0 %610
    %v612 = vsel %vm192, %v609, 0
    %v614 = vsel %vm192, %v611, 0
    %616 = vmatprep.subr.mxu0 0.0
    %617 = vmatpush1.xpose.msra.mxu0 %v614
    %618 = vmatprep.subr.mxu0 0.0
    %619 = vmatpush1.xpose.msra.mxu0 0.0
    %620 = vmatprep.subr.mxu0 0.0
    %621 = vmatpush1.xpose.msra.mxu0 0.0
    %622 = vmatprep.subr.mxu0 0.0
    %623 = vmatpush1.xpose.msra.mxu0 0.0
    %624 = vmatprep.subr.mxu0 0.0
    %625 = vmatpush1.xpose.msra.mxu0 0.0
    %626 = vmatprep.subr.mxu0 0.0
    %627 = vmatpush1.xpose.msra.mxu0 0.0
    %628 = vmatprep.subr.mxu0 0.0
    %629 = vmatpush1.xpose.msra.mxu0 0.0
    %630 = vmatprep.subr.mxu0 0.0
    %631 = vmatpush1.xpose.msra.mxu0 0.0
    %632 = vmatprep.subr.mxu0 0.0
    %633 = vmatpush1.xpose.msra.mxu0 0.0
    %634 = vmatprep.subr.mxu0 0.0
    %635 = vmatpush1.xpose.msra.mxu0 0.0
    %636 = vmatprep.subr.mxu0 0.0
    %637 = vmatpush1.xpose.msra.mxu0 0.0
    %638 = vmatprep.subr.mxu0 0.0
    %639 = vmatpush1.xpose.msra.mxu0 0.0
    %640 = vmatprep.subr.mxu0 0.0
    %641 = vmatpush1.xpose.msra.mxu0 0.0
    %642 = vmatprep.subr.mxu0 0.0
    %643 = vmatpush1.xpose.msra.mxu0 0.0
    %644 = vmatprep.subr.mxu0 0.0
    %645 = vmatpush1.xpose.msra.mxu0 0.0
    %646 = vmatprep.subr.mxu0 0.0
    %647 = vmatpush1.xpose.msra.mxu0 0.0
    %648 = vmatprep.subr.mxu0 0.0
    %649 = vmatpush1.xpose.msra.mxu0 0.0
    %650 = vmatprep.subr.mxu0 0.0
    %651 = vmatpush1.xpose.msra.mxu0 0.0
    %652 = vmatprep.subr.mxu0 0.0
    %653 = vmatpush1.xpose.msra.mxu0 0.0
    %654 = vmatprep.subr.mxu0 0.0
    %655 = vmatpush1.xpose.msra.mxu0 0.0
    %656 = vmatprep.subr.mxu0 0.0
    %657 = vmatpush1.xpose.msra.mxu0 0.0
    %658 = vmatprep.subr.mxu0 0.0
    %659 = vmatpush1.xpose.msra.mxu0 0.0
    %660 = vmatprep.subr.mxu0 0.0
    %661 = vmatpush1.xpose.msra.mxu0 0.0
    %662 = vmatprep.subr.mxu0 0.0
    %663 = vmatpush1.xpose.msra.mxu0 0.0
    %664 = vmatprep.subr.mxu0 0.0
    %665 = vmatpush1.xpose.msra.mxu0 0.0
    %666 = vmatprep.subr.mxu0 0.0
    %667 = vmatpush1.xpose.msra.mxu0 0.0
    %668 = vmatprep.subr.mxu0 0.0
    %669 = vmatpush1.xpose.msra.mxu0 0.0
    %670 = vmatprep.subr.mxu0 0.0
    %671 = vmatpush1.xpose.msra.mxu0 0.0
    %672 = vmatprep.subr.mxu0 0.0
    %673 = vmatpush1.xpose.msra.mxu0 0.0
    %674 = vmatprep.subr.mxu0 0.0
    %675 = vmatpush1.xpose.msra.mxu0 0.0
    %676 = vmatprep.subr.mxu0 0.0
    %677 = vmatpush1.xpose.msra.mxu0 0.0
    %678 = vmatprep.subr.mxu0 0.0
    %679 = vmatpush1.xpose.msra.mxu0 0.0
    %680 = vmatprep.mubr.f32.mxu0 0.0
    %681 = vmatmul.mubr.f32.gmra.mrb[0].mxu0 %v612
    %v682 = vpop.f32.mrb[0].mxu0
    %v683 = vadd.f32 0.0, %v682
    %v684 = vpop.f32.mrb[0].mxu0
    %685 = vdwg.mxu0
    %v686 = vsel %vm192, %v605, -inf
    %687 = vmax.xlane.f32.xlu0 %v686
    %v688 = vpop.xlane.xlu0 %687
    %v689 = vsel %vm192, %v683, -inf
    %690 = vmax.xlane.f32.xlu0 %v689
    %v691 = vpop.xlane.xlu0 %690
    %v692 = vsub.f32 %v605, %v688
    %v693 = vsub.f32 %v683, %v691
    %v694 = vmul.f32 %v692, 1.442695
    %v695 = vpow.pop %v694
    %v696 = vmul.f32 %v693, 1.442695
    %v697 = vpow.pop %v696
    %v698 = vsel %vm192, %v695, 0.0
    %699 = vadd.xlane.f32.xlu0 %v698
    %v700 = vpop.xlane.xlu0 %699
    %v701 = vsel %vm192, %v697, 0.0
    %702 = vadd.xlane.f32.xlu0 %v701
    %v703 = vpop.xlane.xlu0 %702
    %v704 = vrcp.pop %v700
    %v705 = vrcp.pop %v703
    %v706 = vmul.f32 %v695, %v704
    %v707 = vmul.f32 %v697, %v705
    %708 = vrot.lane.b32.xlu0 %v149, 56
    %v709 = vpop.permute.xlu0 %708
    %v712 = vsel %vm192, %v706, 0
    %714 = vmatprep.subr.mxu0 0.0
    %715 = vmatpush1.msra.mxu0 %v709
    %716 = vmatprep.subr.mxu0 0.0
    %717 = vmatpush1.msra.mxu0 0.0
    %718 = vmatprep.subr.mxu0 0.0
    %719 = vmatpush1.msra.mxu0 0.0
    %720 = vmatprep.subr.mxu0 0.0
    %721 = vmatpush1.msra.mxu0 0.0
    %722 = vmatprep.subr.mxu0 0.0
    %723 = vmatpush1.msra.mxu0 0.0
    %724 = vmatprep.subr.mxu0 0.0
    %725 = vmatpush1.msra.mxu0 0.0
    %726 = vmatprep.subr.mxu0 0.0
    %727 = vmatpush1.msra.mxu0 0.0
    %728 = vmatprep.subr.mxu0 0.0
    %729 = vmatpush1.msra.mxu0 0.0
    %730 = vmatprep.subr.mxu0 0.0
    %731 = vmatpush1.msra.mxu0 0.0
    %732 = vmatprep.subr.mxu0 0.0
    %733 = vmatpush1.msra.mxu0 0.0
    %734 = vmatprep.subr.mxu0 0.0
    %735 = vmatpush1.msra.mxu0 0.0
    %736 = vmatprep.subr.mxu0 0.0
    %737 = vmatpush1.msra.mxu0 0.0
    %738 = vmatprep.subr.mxu0 0.0
    %739 = vmatpush1.msra.mxu0 0.0
    %740 = vmatprep.subr.mxu0 0.0
    %741 = vmatpush1.msra.mxu0 0.0
    %742 = vmatprep.subr.mxu0 0.0
    %743 = vmatpush1.msra.mxu0 0.0
    %744 = vmatprep.subr.mxu0 0.0
    %745 = vmatpush1.msra.mxu0 0.0
    %746 = vmatprep.subr.mxu0 0.0
    %747 = vmatpush1.msra.mxu0 0.0
    %748 = vmatprep.subr.mxu0 0.0
    %749 = vmatpush1.msra.mxu0 0.0
    %750 = vmatprep.subr.mxu0 0.0
    %751 = vmatpush1.msra.mxu0 0.0
    %752 = vmatprep.subr.mxu0 0.0
    %753 = vmatpush1.msra.mxu0 0.0
    %754 = vmatprep.subr.mxu0 0.0
    %755 = vmatpush1.msra.mxu0 0.0
    %756 = vmatprep.subr.mxu0 0.0
    %757 = vmatpush1.msra.mxu0 0.0
    %758 = vmatprep.subr.mxu0 0.0
    %759 = vmatpush1.msra.mxu0 0.0
    %760 = vmatprep.subr.mxu0 0.0
    %761 = vmatpush1.msra.mxu0 0.0
    %762 = vmatprep.subr.mxu0 0.0
    %763 = vmatpush1.msra.mxu0 0.0
    %764 = vmatprep.subr.mxu0 0.0
    %765 = vmatpush1.msra.mxu0 0.0
    %766 = vmatprep.subr.mxu0 0.0
    %767 = vmatpush1.msra.mxu0 0.0
    %768 = vmatprep.subr.mxu0 0.0
    %769 = vmatpush1.msra.mxu0 0.0
    %770 = vmatprep.subr.mxu0 0.0
    %771 = vmatpush1.msra.mxu0 0.0
    %772 = vmatprep.subr.mxu0 0.0
    %773 = vmatpush1.msra.mxu0 0.0
    %774 = vmatprep.subr.mxu0 0.0
    %775 = vmatpush1.msra.mxu0 0.0
    %776 = vmatprep.subr.mxu0 0.0
    %777 = vmatpush1.msra.mxu0 0.0
    %778 = vmatprep.mubr.f32.mxu0 0.0
    %779 = vmatmul.mubr.f32.gmra.mrb[0].mxu0 %v712
    %v780 = vpop.f32.mrb[0].mxu0
    %v781 = vadd.f32 0.0, %v780
    %v782 = vpop.f32.mrb[0].mxu0
    %783 = vdwg.mxu0
    %784 = vrot.lane.b32.xlu0 %v154, 56
    %v785 = vpop.permute.xlu0 %784
    %v788 = vsel %vm192, %v707, 0
    %790 = vmatprep.subr.mxu0 0.0
    %791 = vmatpush1.msra.mxu0 %v785
    %792 = vmatprep.subr.mxu0 0.0
    %793 = vmatpush1.msra.mxu0 0.0
    %794 = vmatprep.subr.mxu0 0.0
    %795 = vmatpush1.msra.mxu0 0.0
    %796 = vmatprep.subr.mxu0 0.0
    %797 = vmatpush1.msra.mxu0 0.0
    %798 = vmatprep.subr.mxu0 0.0
    %799 = vmatpush1.msra.mxu0 0.0
    %800 = vmatprep.subr.mxu0 0.0
    %801 = vmatpush1.msra.mxu0 0.0
    %802 = vmatprep.subr.mxu0 0.0
    %803 = vmatpush1.msra.mxu0 0.0
    %804 = vmatprep.subr.mxu0 0.0
    %805 = vmatpush1.msra.mxu0 0.0
    %806 = vmatprep.subr.mxu0 0.0
    %807 = vmatpush1.msra.mxu0 0.0
    %808 = vmatprep.subr.mxu0 0.0
    %809 = vmatpush1.msra.mxu0 0.0
    %810 = vmatprep.subr.mxu0 0.0
    %811 = vmatpush1.msra.mxu0 0.0
    %812 = vmatprep.subr.mxu0 0.0
    %813 = vmatpush1.msra.mxu0 0.0
    %814 = vmatprep.subr.mxu0 0.0
    %815 = vmatpush1.msra.mxu0 0.0
    %816 = vmatprep.subr.mxu0 0.0
    %817 = vmatpush1.msra.mxu0 0.0
    %818 = vmatprep.subr.mxu0 0.0
    %819 = vmatpush1.msra.mxu0 0.0
    %820 = vmatprep.subr.mxu0 0.0
    %821 = vmatpush1.msra.mxu0 0.0
    %822 = vmatprep.subr.mxu0 0.0
    %823 = vmatpush1.msra.mxu0 0.0
    %824 = vmatprep.subr.mxu0 0.0
    %825 = vmatpush1.msra.mxu0 0.0
    %826 = vmatprep.subr.mxu0 0.0
    %827 = vmatpush1.msra.mxu0 0.0
    %828 = vmatprep.subr.mxu0 0.0
    %829 = vmatpush1.msra.mxu0 0.0
    %830 = vmatprep.subr.mxu0 0.0
    %831 = vmatpush1.msra.mxu0 0.0
    %832 = vmatprep.subr.mxu0 0.0
    %833 = vmatpush1.msra.mxu0 0.0
    %834 = vmatprep.subr.mxu0 0.0
    %835 = vmatpush1.msra.mxu0 0.0
    %836 = vmatprep.subr.mxu0 0.0
    %837 = vmatpush1.msra.mxu0 0.0
    %838 = vmatprep.subr.mxu0 0.0
    %839 = vmatpush1.msra.mxu0 0.0
    %840 = vmatprep.subr.mxu0 0.0
    %841 = vmatpush1.msra.mxu0 0.0
    %842 = vmatprep.subr.mxu0 0.0
    %843 = vmatpush1.msra.mxu0 0.0
    %844 = vmatprep.subr.mxu0 0.0
    %845 = vmatpush1.msra.mxu0 0.0
    %846 = vmatprep.subr.mxu0 0.0
    %847 = vmatpush1.msra.mxu0 0.0
    %848 = vmatprep.subr.mxu0 0.0
    %849 = vmatpush1.msra.mxu0 0.0
    %850 = vmatprep.subr.mxu0 0.0
    %851 = vmatpush1.msra.mxu0 0.0
    %852 = vmatprep.subr.mxu0 0.0
    %853 = vmatpush1.msra.mxu0 0.0
    %854 = vmatprep.mubr.f32.mxu0 0.0
    %855 = vmatmul.mubr.f32.gmra.mrb[0].mxu0 %v788
    %v856 = vpop.f32.mrb[0].mxu0
    %v857 = vadd.f32 0.0, %v856
    %v858 = vpop.f32.mrb[0].mxu0
    %859 = vdwg.mxu0
    %860 = vset.pattern.permute.xlu0 97
    %861 = vperm.xlu0 %860, %v187
    %v862 = vpop.permute.xlu0 %861
    %864 = vset.pattern.permute.xlu0 97
    %865 = vperm.xlu0 %864, %v188
    %v866 = vpop.permute.xlu0 %865
    %v868 = vmul.f32 %v781, %v862
    %v869 = vmul.f32 %v857, %v866
    %870 = vrot.lane.b32.xlu0 %v149, 112
    %v871 = vpop.permute.xlu0 %870
    %872 = vrot.lane.b32.xlu0 %v149, 80
    %v873 = vpop.permute.xlu0 %872
    %v874 = vsel %vm192, %v871, 0
    %v876 = vsel %vm192, %v873, 0
    %878 = vmatprep.subr.mxu0 0.0
    %879 = vmatpush1.xpose.msra.mxu0 %v876
    %880 = vmatprep.subr.mxu0 0.0
    %881 = vmatpush1.xpose.msra.mxu0 0.0
    %882 = vmatprep.subr.mxu0 0.0
    %883 = vmatpush1.xpose.msra.mxu0 0.0
    %884 = vmatprep.subr.mxu0 0.0
    %885 = vmatpush1.xpose.msra.mxu0 0.0
    %886 = vmatprep.subr.mxu0 0.0
    %887 = vmatpush1.xpose.msra.mxu0 0.0
    %888 = vmatprep.subr.mxu0 0.0
    %889 = vmatpush1.xpose.msra.mxu0 0.0
    %890 = vmatprep.subr.mxu0 0.0
    %891 = vmatpush1.xpose.msra.mxu0 0.0
    %892 = vmatprep.subr.mxu0 0.0
    %893 = vmatpush1.xpose.msra.mxu0 0.0
    %894 = vmatprep.subr.mxu0 0.0
    %895 = vmatpush1.xpose.msra.mxu0 0.0
    %896 = vmatprep.subr.mxu0 0.0
    %897 = vmatpush1.xpose.msra.mxu0 0.0
    %898 = vmatprep.subr.mxu0 0.0
    %899 = vmatpush1.xpose.msra.mxu0 0.0
    %900 = vmatprep.subr.mxu0 0.0
    %901 = vmatpush1.xpose.msra.mxu0 0.0
    %902 = vmatprep.subr.mxu0 0.0
    %903 = vmatpush1.xpose.msra.mxu0 0.0
    %904 = vmatprep.subr.mxu0 0.0
    %905 = vmatpush1.xpose.msra.mxu0 0.0
    %906 = vmatprep.subr.mxu0 0.0
    %907 = vmatpush1.xpose.msra.mxu0 0.0
    %908 = vmatprep.subr.mxu0 0.0
    %909 = vmatpush1.xpose.msra.mxu0 0.0
    %910 = vmatprep.subr.mxu0 0.0
    %911 = vmatpush1.xpose.msra.mxu0 0.0
    %912 = vmatprep.subr.mxu0 0.0
    %913 = vmatpush1.xpose.msra.mxu0 0.0
    %914 = vmatprep.subr.mxu0 0.0
    %915 = vmatpush1.xpose.msra.mxu0 0.0
    %916 = vmatprep.subr.mxu0 0.0
    %917 = vmatpush1.xpose.msra.mxu0 0.0
    %918 = vmatprep.subr.mxu0 0.0
    %919 = vmatpush1.xpose.msra.mxu0 0.0
    %920 = vmatprep.subr.mxu0 0.0
    %921 = vmatpush1.xpose.msra.mxu0 0.0
    %922 = vmatprep.subr.mxu0 0.0
    %923 = vmatpush1.xpose.msra.mxu0 0.0
    %924 = vmatprep.subr.mxu0 0.0
    %925 = vmatpush1.xpose.msra.mxu0 0.0
    %926 = vmatprep.subr.mxu0 0.0
    %927 = vmatpush1.xpose.msra.mxu0 0.0
    %928 = vmatprep.subr.mxu0 0.0
    %929 = vmatpush1.xpose.msra.mxu0 0.0
    %930 = vmatprep.subr.mxu0 0.0
    %931 = vmatpush1.xpose.msra.mxu0 0.0
    %932 = vmatprep.subr.mxu0 0.0
    %933 = vmatpush1.xpose.msra.mxu0 0.0
    %934 = vmatprep.subr.mxu0 0.0
    %935 = vmatpush1.xpose.msra.mxu0 0.0
    %936 = vmatprep.subr.mxu0 0.0
    %937 = vmatpush1.xpose.msra.mxu0 0.0
    %938 = vmatprep.subr.mxu0 0.0
    %939 = vmatpush1.xpose.msra.mxu0 0.0
    %940 = vmatprep.subr.mxu0 0.0
    %941 = vmatpush1.xpose.msra.mxu0 0.0
    %942 = vmatprep.mubr.f32.mxu0 0.0
    %943 = vmatmul.mubr.f32.gmra.mrb[0].mxu0 %v874
    %v944 = vpop.f32.mrb[0].mxu0
    %v945 = vadd.f32 0.0, %v944
    %v946 = vpop.f32.mrb[0].mxu0
    %947 = vdwg.mxu0
    %948 = vrot.lane.b32.xlu0 %v154, 112
    %v949 = vpop.permute.xlu0 %948
    %950 = vrot.lane.b32.xlu0 %v154, 80
    %v951 = vpop.permute.xlu0 %950
    %v952 = vsel %vm192, %v949, 0
    %v954 = vsel %vm192, %v951, 0
    %956 = vmatprep.subr.mxu0 0.0
    %957 = vmatpush1.xpose.msra.mxu0 %v954
    %958 = vmatprep.subr.mxu0 0.0
    %959 = vmatpush1.xpose.msra.mxu0 0.0
    %960 = vmatprep.subr.mxu0 0.0
    %961 = vmatpush1.xpose.msra.mxu0 0.0
    %962 = vmatprep.subr.mxu0 0.0
    %963 = vmatpush1.xpose.msra.mxu0 0.0
    %964 = vmatprep.subr.mxu0 0.0
    %965 = vmatpush1.xpose.msra.mxu0 0.0
    %966 = vmatprep.subr.mxu0 0.0
    %967 = vmatpush1.xpose.msra.mxu0 0.0
    %968 = vmatprep.subr.mxu0 0.0
    %969 = vmatpush1.xpose.msra.mxu0 0.0
    %970 = vmatprep.subr.mxu0 0.0
    %971 = vmatpush1.xpose.msra.mxu0 0.0
    %972 = vmatprep.subr.mxu0 0.0
    %973 = vmatpush1.xpose.msra.mxu0 0.0
    %974 = vmatprep.subr.mxu0 0.0
    %975 = vmatpush1.xpose.msra.mxu0 0.0
    %976 = vmatprep.subr.mxu0 0.0
    %977 = vmatpush1.xpose.msra.mxu0 0.0
    %978 = vmatprep.subr.mxu0 0.0
    %979 = vmatpush1.xpose.msra.mxu0 0.0
    %980 = vmatprep.subr.mxu0 0.0
    %981 = vmatpush1.xpose.msra.mxu0 0.0
    %982 = vmatprep.subr.mxu0 0.0
    %983 = vmatpush1.xpose.msra.mxu0 0.0
    %984 = vmatprep.subr.mxu0 0.0
    %985 = vmatpush1.xpose.msra.mxu0 0.0
    %986 = vmatprep.subr.mxu0 0.0
    %987 = vmatpush1.xpose.msra.mxu0 0.0
    %988 = vmatprep.subr.mxu0 0.0
    %989 = vmatpush1.xpose.msra.mxu0 0.0
    %990 = vmatprep.subr.mxu0 0.0
    %991 = vmatpush1.xpose.msra.mxu0 0.0
    %992 = vmatprep.subr.mxu0 0.0
    %993 = vmatpush1.xpose.msra.mxu0 0.0
    %994 = vmatprep.subr.mxu0 0.0
    %995 = vmatpush1.xpose.msra.mxu0 0.0
    %996 = vmatprep.subr.mxu0 0.0
    %997 = vmatpush1.xpose.msra.mxu0 0.0
    %998 = vmatprep.subr.mxu0 0.0
    %999 = vmatpush1.xpose.msra.mxu0 0.0
    %1000 = vmatprep.subr.mxu0 0.0
    %1001 = vmatpush1.xpose.msra.mxu0 0.0
    %1002 = vmatprep.subr.mxu0 0.0
    %1003 = vmatpush1.xpose.msra.mxu0 0.0
    %1004 = vmatprep.subr.mxu0 0.0
    %1005 = vmatpush1.xpose.msra.mxu0 0.0
    %1006 = vmatprep.subr.mxu0 0.0
    %1007 = vmatpush1.xpose.msra.mxu0 0.0
    %1008 = vmatprep.subr.mxu0 0.0
    %1009 = vmatpush1.xpose.msra.mxu0 0.0
    %1010 = vmatprep.subr.mxu0 0.0
    %1011 = vmatpush1.xpose.msra.mxu0 0.0
    %1012 = vmatprep.subr.mxu0 0.0
    %1013 = vmatpush1.xpose.msra.mxu0 0.0
    %1014 = vmatprep.subr.mxu0 0.0
    %1015 = vmatpush1.xpose.msra.mxu0 0.0
    %1016 = vmatprep.subr.mxu0 0.0
    %1017 = vmatpush1.xpose.msra.mxu0 0.0
    %1018 = vmatprep.subr.mxu0 0.0
    %1019 = vmatpush1.xpose.msra.mxu0 0.0
    %1020 = vmatprep.mubr.f32.mxu0 0.0
    %1021 = vmatmul.mubr.f32.gmra.mrb[0].mxu0 %v952
    %v1022 = vpop.f32.mrb[0].mxu0
    %v1023 = vadd.f32 0.0, %v1022
    %v1024 = vpop.f32.mrb[0].mxu0
    %1025 = vdwg.mxu0
    %v1026 = vsel %vm192, %v945, -inf
    %1027 = vmax.xlane.f32.xlu0 %v1026
    %v1028 = vpop.xlane.xlu0 %1027
    %v1029 = vsel %vm192, %v1023, -inf
    %1030 = vmax.xlane.f32.xlu0 %v1029
    %v1031 = vpop.xlane.xlu0 %1030
    %v1032 = vsub.f32 %v945, %v1028
    %v1033 = vsub.f32 %v1023, %v1031
    %v1034 = vmul.f32 %v1032, 1.442695
    %v1035 = vpow.pop %v1034
    %v1036 = vmul.f32 %v1033, 1.442695
    %v1037 = vpow.pop %v1036
    %v1038 = vsel %vm192, %v1035, 0.0
    %1039 = vadd.xlane.f32.xlu0 %v1038
    %v1040 = vpop.xlane.xlu0 %1039
    %v1041 = vsel %vm192, %v1037, 0.0
    %1042 = vadd.xlane.f32.xlu0 %v1041
    %v1043 = vpop.xlane.xlu0 %1042
    %v1044 = vrcp.pop %v1040
    %v1045 = vrcp.pop %v1043
    %v1046 = vmul.f32 %v1035, %v1044
    %v1047 = vmul.f32 %v1037, %v1045
    %1048 = vrot.lane.b32.xlu0 %v149, 48
    %v1049 = vpop.permute.xlu0 %1048
    %v1052 = vsel %vm192, %v1046, 0
    %1054 = vmatprep.subr.mxu0 0.0
    %1055 = vmatpush1.msra.mxu0 %v1049
    %1056 = vmatprep.subr.mxu0 0.0
    %1057 = vmatpush1.msra.mxu0 0.0
    %1058 = vmatprep.subr.mxu0 0.0
    %1059 = vmatpush1.msra.mxu0 0.0
    %1060 = vmatprep.subr.mxu0 0.0
    %1061 = vmatpush1.msra.mxu0 0.0
    %1062 = vmatprep.subr.mxu0 0.0
    %1063 = vmatpush1.msra.mxu0 0.0
    %1064 = vmatprep.subr.mxu0 0.0
    %1065 = vmatpush1.msra.mxu0 0.0
    %1066 = vmatprep.subr.mxu0 0.0
    %1067 = vmatpush1.msra.mxu0 0.0
    %1068 = vmatprep.subr.mxu0 0.0
    %1069 = vmatpush1.msra.mxu0 0.0
    %1070 = vmatprep.subr.mxu0 0.0
    %1071 = vmatpush1.msra.mxu0 0.0
    %1072 = vmatprep.subr.mxu0 0.0
    %1073 = vmatpush1.msra.mxu0 0.0
    %1074 = vmatprep.subr.mxu0 0.0
    %1075 = vmatpush1.msra.mxu0 0.0
    %1076 = vmatprep.subr.mxu0 0.0
    %1077 = vmatpush1.msra.mxu0 0.0
    %1078 = vmatprep.subr.mxu0 0.0
    %1079 = vmatpush1.msra.mxu0 0.0
    %1080 = vmatprep.subr.mxu0 0.0
    %1081 = vmatpush1.msra.mxu0 0.0
    %1082 = vmatprep.subr.mxu0 0.0
    %1083 = vmatpush1.msra.mxu0 0.0
    %1084 = vmatprep.subr.mxu0 0.0
    %1085 = vmatpush1.msra.mxu0 0.0
    %1086 = vmatprep.subr.mxu0 0.0
    %1087 = vmatpush1.msra.mxu0 0.0
    %1088 = vmatprep.subr.mxu0 0.0
    %1089 = vmatpush1.msra.mxu0 0.0
    %1090 = vmatprep.subr.mxu0 0.0
    %1091 = vmatpush1.msra.mxu0 0.0
    %1092 = vmatprep.subr.mxu0 0.0
    %1093 = vmatpush1.msra.mxu0 0.0
    %1094 = vmatprep.subr.mxu0 0.0
    %1095 = vmatpush1.msra.mxu0 0.0
    %1096 = vmatprep.subr.mxu0 0.0
    %1097 = vmatpush1.msra.mxu0 0.0
    %1098 = vmatprep.subr.mxu0 0.0
    %1099 = vmatpush1.msra.mxu0 0.0
    %1100 = vmatprep.subr.mxu0 0.0
    %1101 = vmatpush1.msra.mxu0 0.0
    %1102 = vmatprep.subr.mxu0 0.0
    %1103 = vmatpush1.msra.mxu0 0.0
    %1104 = vmatprep.subr.mxu0 0.0
    %1105 = vmatpush1.msra.mxu0 0.0
    %1106 = vmatprep.subr.mxu0 0.0
    %1107 = vmatpush1.msra.mxu0 0.0
    %1108 = vmatprep.subr.mxu0 0.0
    %1109 = vmatpush1.msra.mxu0 0.0
    %1110 = vmatprep.subr.mxu0 0.0
    %1111 = vmatpush1.msra.mxu0 0.0
    %1112 = vmatprep.subr.mxu0 0.0
    %1113 = vmatpush1.msra.mxu0 0.0
    %1114 = vmatprep.subr.mxu0 0.0
    %1115 = vmatpush1.msra.mxu0 0.0
    %1116 = vmatprep.subr.mxu0 0.0
    %1117 = vmatpush1.msra.mxu0 0.0
    %1118 = vmatprep.mubr.f32.mxu0 0.0
    %1119 = vmatmul.mubr.f32.gmra.mrb[0].mxu0 %v1052
    %v1120 = vpop.f32.mrb[0].mxu0
    %v1121 = vadd.f32 0.0, %v1120
    %v1122 = vpop.f32.mrb[0].mxu0
    %1123 = vdwg.mxu0
    %1124 = vrot.lane.b32.xlu0 %v154, 48
    %v1125 = vpop.permute.xlu0 %1124
    %v1128 = vsel %vm192, %v1047, 0
    %1130 = vmatprep.subr.mxu0 0.0
    %1131 = vmatpush1.msra.mxu0 %v1125
    %1132 = vmatprep.subr.mxu0 0.0
    %1133 = vmatpush1.msra.mxu0 0.0
    %1134 = vmatprep.subr.mxu0 0.0
    %1135 = vmatpush1.msra.mxu0 0.0
    %1136 = vmatprep.subr.mxu0 0.0
    %1137 = vmatpush1.msra.mxu0 0.0
    %1138 = vmatprep.subr.mxu0 0.0
    %1139 = vmatpush1.msra.mxu0 0.0
    %1140 = vmatprep.subr.mxu0 0.0
    %1141 = vmatpush1.msra.mxu0 0.0
    %1142 = vmatprep.subr.mxu0 0.0
    %1143 = vmatpush1.msra.mxu0 0.0
    %1144 = vmatprep.subr.mxu0 0.0
    %1145 = vmatpush1.msra.mxu0 0.0
    %1146 = vmatprep.subr.mxu0 0.0
    %1147 = vmatpush1.msra.mxu0 0.0
    %1148 = vmatprep.subr.mxu0 0.0
    %1149 = vmatpush1.msra.mxu0 0.0
    %1150 = vmatprep.subr.mxu0 0.0
    %1151 = vmatpush1.msra.mxu0 0.0
    %1152 = vmatprep.subr.mxu0 0.0
    %1153 = vmatpush1.msra.mxu0 0.0
    %1154 = vmatprep.subr.mxu0 0.0
    %1155 = vmatpush1.msra.mxu0 0.0
    %1156 = vmatprep.subr.mxu0 0.0
    %1157 = vmatpush1.msra.mxu0 0.0
    %1158 = vmatprep.subr.mxu0 0.0
    %1159 = vmatpush1.msra.mxu0 0.0
    %1160 = vmatprep.subr.mxu0 0.0
    %1161 = vmatpush1.msra.mxu0 0.0
    %1162 = vmatprep.subr.mxu0 0.0
    %1163 = vmatpush1.msra.mxu0 0.0
    %1164 = vmatprep.subr.mxu0 0.0
    %1165 = vmatpush1.msra.mxu0 0.0
    %1166 = vmatprep.subr.mxu0 0.0
    %1167 = vmatpush1.msra.mxu0 0.0
    %1168 = vmatprep.subr.mxu0 0.0
    %1169 = vmatpush1.msra.mxu0 0.0
    %1170 = vmatprep.subr.mxu0 0.0
    %1171 = vmatpush1.msra.mxu0 0.0
    %1172 = vmatprep.subr.mxu0 0.0
    %1173 = vmatpush1.msra.mxu0 0.0
    %1174 = vmatprep.subr.mxu0 0.0
    %1175 = vmatpush1.msra.mxu0 0.0
    %1176 = vmatprep.subr.mxu0 0.0
    %1177 = vmatpush1.msra.mxu0 0.0
    %1178 = vmatprep.subr.mxu0 0.0
    %1179 = vmatpush1.msra.mxu0 0.0
    %1180 = vmatprep.subr.mxu0 0.0
    %1181 = vmatpush1.msra.mxu0 0.0
    %1182 = vmatprep.subr.mxu0 0.0
    %1183 = vmatpush1.msra.mxu0 0.0
    %1184 = vmatprep.subr.mxu0 0.0
    %1185 = vmatpush1.msra.mxu0 0.0
    %1186 = vmatprep.subr.mxu0 0.0
    %1187 = vmatpush1.msra.mxu0 0.0
    %1188 = vmatprep.subr.mxu0 0.0
    %1189 = vmatpush1.msra.mxu0 0.0
    %1190 = vmatprep.subr.mxu0 0.0
    %1191 = vmatpush1.msra.mxu0 0.0
    %1192 = vmatprep.subr.mxu0 0.0
    %1193 = vmatpush1.msra.mxu0 0.0
    %1194 = vmatprep.mubr.f32.mxu0 0.0
    %1195 = vmatmul.mubr.f32.gmra.mrb[0].mxu0 %v1128
    %v1196 = vpop.f32.mrb[0].mxu0
    %v1197 = vadd.f32 0.0, %v1196
    %v1198 = vpop.f32.mrb[0].mxu0
    %1199 = vdwg.mxu0
    %1200 = vset.pattern.permute.xlu0 98
    %1201 = vperm.xlu0 %1200, %v187
    %v1202 = vpop.permute.xlu0 %1201
    %1204 = vset.pattern.permute.xlu0 98
    %1205 = vperm.xlu0 %1204, %v188
    %v1206 = vpop.permute.xlu0 %1205
    %v1208 = vmul.f32 %v1121, %v1202
    %v1209 = vmul.f32 %v1197, %v1206
    %1210 = vrot.lane.b32.xlu0 %v149, 104
    %v1211 = vpop.permute.xlu0 %1210
    %1212 = vrot.lane.b32.xlu0 %v149, 72
    %v1213 = vpop.permute.xlu0 %1212
    %v1214 = vsel %vm192, %v1211, 0
    %v1216 = vsel %vm192, %v1213, 0
    %1218 = vmatprep.subr.mxu0 0.0
    %1219 = vmatpush1.xpose.msra.mxu0 %v1216
    %1220 = vmatprep.subr.mxu0 0.0
    %1221 = vmatpush1.xpose.msra.mxu0 0.0
    %1222 = vmatprep.subr.mxu0 0.0
    %1223 = vmatpush1.xpose.msra.mxu0 0.0
    %1224 = vmatprep.subr.mxu0 0.0
    %1225 = vmatpush1.xpose.msra.mxu0 0.0
    %1226 = vmatprep.subr.mxu0 0.0
    %1227 = vmatpush1.xpose.msra.mxu0 0.0
    %1228 = vmatprep.subr.mxu0 0.0
    %1229 = vmatpush1.xpose.msra.mxu0 0.0
    %1230 = vmatprep.subr.mxu0 0.0
    %1231 = vmatpush1.xpose.msra.mxu0 0.0
    %1232 = vmatprep.subr.mxu0 0.0
    %1233 = vmatpush1.xpose.msra.mxu0 0.0
    %1234 = vmatprep.subr.mxu0 0.0
    %1235 = vmatpush1.xpose.msra.mxu0 0.0
    %1236 = vmatprep.subr.mxu0 0.0
    %1237 = vmatpush1.xpose.msra.mxu0 0.0
    %1238 = vmatprep.subr.mxu0 0.0
    %1239 = vmatpush1.xpose.msra.mxu0 0.0
    %1240 = vmatprep.subr.mxu0 0.0
    %1241 = vmatpush1.xpose.msra.mxu0 0.0
    %1242 = vmatprep.subr.mxu0 0.0
    %1243 = vmatpush1.xpose.msra.mxu0 0.0
    %1244 = vmatprep.subr.mxu0 0.0
    %1245 = vmatpush1.xpose.msra.mxu0 0.0
    %1246 = vmatprep.subr.mxu0 0.0
    %1247 = vmatpush1.xpose.msra.mxu0 0.0
    %1248 = vmatprep.subr.mxu0 0.0
    %1249 = vmatpush1.xpose.msra.mxu0 0.0
    %1250 = vmatprep.subr.mxu0 0.0
    %1251 = vmatpush1.xpose.msra.mxu0 0.0
    %1252 = vmatprep.subr.mxu0 0.0
    %1253 = vmatpush1.xpose.msra.mxu0 0.0
    %1254 = vmatprep.subr.mxu0 0.0
    %1255 = vmatpush1.xpose.msra.mxu0 0.0
    %1256 = vmatprep.subr.mxu0 0.0
    %1257 = vmatpush1.xpose.msra.mxu0 0.0
    %1258 = vmatprep.subr.mxu0 0.0
    %1259 = vmatpush1.xpose.msra.mxu0 0.0
    %1260 = vmatprep.subr.mxu0 0.0
    %1261 = vmatpush1.xpose.msra.mxu0 0.0
    %1262 = vmatprep.subr.mxu0 0.0
    %1263 = vmatpush1.xpose.msra.mxu0 0.0
    %1264 = vmatprep.subr.mxu0 0.0
    %1265 = vmatpush1.xpose.msra.mxu0 0.0
    %1266 = vmatprep.subr.mxu0 0.0
    %1267 = vmatpush1.xpose.msra.mxu0 0.0
    %1268 = vmatprep.subr.mxu0 0.0
    %1269 = vmatpush1.xpose.msra.mxu0 0.0
    %1270 = vmatprep.subr.mxu0 0.0
    %1271 = vmatpush1.xpose.msra.mxu0 0.0
    %1272 = vmatprep.subr.mxu0 0.0
    %1273 = vmatpush1.xpose.msra.mxu0 0.0
    %1274 = vmatprep.subr.mxu0 0.0
    %1275 = vmatpush1.xpose.msra.mxu0 0.0
    %1276 = vmatprep.subr.mxu0 0.0
    %1277 = vmatpush1.xpose.msra.mxu0 0.0
    %1278 = vmatprep.subr.mxu0 0.0
    %1279 = vmatpush1.xpose.msra.mxu0 0.0
    %1280 = vmatprep.subr.mxu0 0.0
    %1281 = vmatpush1.xpose.msra.mxu0 0.0
    %1282 = vmatprep.mubr.f32.mxu0 0.0
    %1283 = vmatmul.mubr.f32.gmra.mrb[0].mxu0 %v1214
    %v1284 = vpop.f32.mrb[0].mxu0
    %v1285 = vadd.f32 0.0, %v1284
    %v1286 = vpop.f32.mrb[0].mxu0
    %1287 = vdwg.mxu0
    %1288 = vrot.lane.b32.xlu0 %v154, 104
    %v1289 = vpop.permute.xlu0 %1288
    %1290 = vrot.lane.b32.xlu0 %v154, 72
    %v1291 = vpop.permute.xlu0 %1290
    %v1292 = vsel %vm192, %v1289, 0
    %v1294 = vsel %vm192, %v1291, 0
    %1296 = vmatprep.subr.mxu0 0.0
    %1297 = vmatpush1.xpose.msra.mxu0 %v1294
    %1298 = vmatprep.subr.mxu0 0.0
    %1299 = vmatpush1.xpose.msra.mxu0 0.0
    %1300 = vmatprep.subr.mxu0 0.0
    %1301 = vmatpush1.xpose.msra.mxu0 0.0
    %1302 = vmatprep.subr.mxu0 0.0
    %1303 = vmatpush1.xpose.msra.mxu0 0.0
    %1304 = vmatprep.subr.mxu0 0.0
    %1305 = vmatpush1.xpose.msra.mxu0 0.0
    %1306 = vmatprep.subr.mxu0 0.0
    %1307 = vmatpush1.xpose.msra.mxu0 0.0
    %1308 = vmatprep.subr.mxu0 0.0
    %1309 = vmatpush1.xpose.msra.mxu0 0.0
    %1310 = vmatprep.subr.mxu0 0.0
    %1311 = vmatpush1.xpose.msra.mxu0 0.0
    %1312 = vmatprep.subr.mxu0 0.0
    %1313 = vmatpush1.xpose.msra.mxu0 0.0
    %1314 = vmatprep.subr.mxu0 0.0
    %1315 = vmatpush1.xpose.msra.mxu0 0.0
    %1316 = vmatprep.subr.mxu0 0.0
    %1317 = vmatpush1.xpose.msra.mxu0 0.0
    %1318 = vmatprep.subr.mxu0 0.0
    %1319 = vmatpush1.xpose.msra.mxu0 0.0
    %1320 = vmatprep.subr.mxu0 0.0
    %1321 = vmatpush1.xpose.msra.mxu0 0.0
    %1322 = vmatprep.subr.mxu0 0.0
    %1323 = vmatpush1.xpose.msra.mxu0 0.0
    %1324 = vmatprep.subr.mxu0 0.0
    %1325 = vmatpush1.xpose.msra.mxu0 0.0
    %1326 = vmatprep.subr.mxu0 0.0
    %1327 = vmatpush1.xpose.msra.mxu0 0.0
    %1328 = vmatprep.subr.mxu0 0.0
    %1329 = vmatpush1.xpose.msra.mxu0 0.0
    %1330 = vmatprep.subr.mxu0 0.0
    %1331 = vmatpush1.xpose.msra.mxu0 0.0
    %1332 = vmatprep.subr.mxu0 0.0
    %1333 = vmatpush1.xpose.msra.mxu0 0.0
    %1334 = vmatprep.subr.mxu0 0.0
    %1335 = vmatpush1.xpose.msra.mxu0 0.0
    %1336 = vmatprep.subr.mxu0 0.0
    %1337 = vmatpush1.xpose.msra.mxu0 0.0
    %1338 = vmatprep.subr.mxu0 0.0
    %1339 = vmatpush1.xpose.msra.mxu0 0.0
    %1340 = vmatprep.subr.mxu0 0.0
    %1341 = vmatpush1.xpose.msra.mxu0 0.0
    %1342 = vmatprep.subr.mxu0 0.0
    %1343 = vmatpush1.xpose.msra.mxu0 0.0
    %1344 = vmatprep.subr.mxu0 0.0
    %1345 = vmatpush1.xpose.msra.mxu0 0.0
    %1346 = vmatprep.subr.mxu0 0.0
    %1347 = vmatpush1.xpose.msra.mxu0 0.0
    %1348 = vmatprep.subr.mxu0 0.0
    %1349 = vmatpush1.xpose.msra.mxu0 0.0
    %1350 = vmatprep.subr.mxu0 0.0
    %1351 = vmatpush1.xpose.msra.mxu0 0.0
    %1352 = vmatprep.subr.mxu0 0.0
    %1353 = vmatpush1.xpose.msra.mxu0 0.0
    %1354 = vmatprep.subr.mxu0 0.0
    %1355 = vmatpush1.xpose.msra.mxu0 0.0
    %1356 = vmatprep.subr.mxu0 0.0
    %1357 = vmatpush1.xpose.msra.mxu0 0.0
    %1358 = vmatprep.subr.mxu0 0.0
    %1359 = vmatpush1.xpose.msra.mxu0 0.0
    %1360 = vmatprep.mubr.f32.mxu0 0.0
    %1361 = vmatmul.mubr.f32.gmra.mrb[0].mxu0 %v1292
    %v1362 = vpop.f32.mrb[0].mxu0
    %v1363 = vadd.f32 0.0, %v1362
    %v1364 = vpop.f32.mrb[0].mxu0
    %1365 = vdwg.mxu0
    %v1366 = vsel %vm192, %v1285, -inf
    %1367 = vmax.xlane.f32.xlu0 %v1366
    %v1368 = vpop.xlane.xlu0 %1367
    %v1369 = vsel %vm192, %v1363, -inf
    %1370 = vmax.xlane.f32.xlu0 %v1369
    %v1371 = vpop.xlane.xlu0 %1370
    %v1372 = vsub.f32 %v1285, %v1368
    %v1373 = vsub.f32 %v1363, %v1371
    %v1374 = vmul.f32 %v1372, 1.442695
    %v1375 = vpow.pop %v1374
    %v1376 = vmul.f32 %v1373, 1.442695
    %v1377 = vpow.pop %v1376
    %v1378 = vsel %vm192, %v1375, 0.0
    %1379 = vadd.xlane.f32.xlu0 %v1378
    %v1380 = vpop.xlane.xlu0 %1379
    %v1381 = vsel %vm192, %v1377, 0.0
    %1382 = vadd.xlane.f32.xlu0 %v1381
    %v1383 = vpop.xlane.xlu0 %1382
    %v1384 = vrcp.pop %v1380
    %v1385 = vrcp.pop %v1383
    %v1386 = vmul.f32 %v1375, %v1384
    %v1387 = vmul.f32 %v1377, %v1385
    %1388 = vrot.lane.b32.xlu0 %v149, 40
    %v1389 = vpop.permute.xlu0 %1388
    %v1392 = vsel %vm192, %v1386, 0
    %1394 = vmatprep.subr.mxu0 0.0
    %1395 = vmatpush1.msra.mxu0 %v1389
    %1396 = vmatprep.subr.mxu0 0.0
    %1397 = vmatpush1.msra.mxu0 0.0
    %1398 = vmatprep.subr.mxu0 0.0
    %1399 = vmatpush1.msra.mxu0 0.0
    %1400 = vmatprep.subr.mxu0 0.0
    %1401 = vmatpush1.msra.mxu0 0.0
    %1402 = vmatprep.subr.mxu0 0.0
    %1403 = vmatpush1.msra.mxu0 0.0
    %1404 = vmatprep.subr.mxu0 0.0
    %1405 = vmatpush1.msra.mxu0 0.0
    %1406 = vmatprep.subr.mxu0 0.0
    %1407 = vmatpush1.msra.mxu0 0.0
    %1408 = vmatprep.subr.mxu0 0.0
    %1409 = vmatpush1.msra.mxu0 0.0
    %1410 = vmatprep.subr.mxu0 0.0
    %1411 = vmatpush1.msra.mxu0 0.0
    %1412 = vmatprep.subr.mxu0 0.0
    %1413 = vmatpush1.msra.mxu0 0.0
    %1414 = vmatprep.subr.mxu0 0.0
    %1415 = vmatpush1.msra.mxu0 0.0
    %1416 = vmatprep.subr.mxu0 0.0
    %1417 = vmatpush1.msra.mxu0 0.0
    %1418 = vmatprep.subr.mxu0 0.0
    %1419 = vmatpush1.msra.mxu0 0.0
    %1420 = vmatprep.subr.mxu0 0.0
    %1421 = vmatpush1.msra.mxu0 0.0
    %1422 = vmatprep.subr.mxu0 0.0
    %1423 = vmatpush1.msra.mxu0 0.0
    %1424 = vmatprep.subr.mxu0 0.0
    %1425 = vmatpush1.msra.mxu0 0.0
    %1426 = vmatprep.subr.mxu0 0.0
    %1427 = vmatpush1.msra.mxu0 0.0
    %1428 = vmatprep.subr.mxu0 0.0
    %1429 = vmatpush1.msra.mxu0 0.0
    %1430 = vmatprep.subr.mxu0 0.0
    %1431 = vmatpush1.msra.mxu0 0.0
    %1432 = vmatprep.subr.mxu0 0.0
    %1433 = vmatpush1.msra.mxu0 0.0
    %1434 = vmatprep.subr.mxu0 0.0
    %1435 = vmatpush1.msra.mxu0 0.0
    %1436 = vmatprep.subr.mxu0 0.0
    %1437 = vmatpush1.msra.mxu0 0.0
    %1438 = vmatprep.subr.mxu0 0.0
    %1439 = vmatpush1.msra.mxu0 0.0
    %1440 = vmatprep.subr.mxu0 0.0
    %1441 = vmatpush1.msra.mxu0 0.0
    %1442 = vmatprep.subr.mxu0 0.0
    %1443 = vmatpush1.msra.mxu0 0.0
    %1444 = vmatprep.subr.mxu0 0.0
    %1445 = vmatpush1.msra.mxu0 0.0
    %1446 = vmatprep.subr.mxu0 0.0
    %1447 = vmatpush1.msra.mxu0 0.0
    %1448 = vmatprep.subr.mxu0 0.0
    %1449 = vmatpush1.msra.mxu0 0.0
    %1450 = vmatprep.subr.mxu0 0.0
    %1451 = vmatpush1.msra.mxu0 0.0
    %1452 = vmatprep.subr.mxu0 0.0
    %1453 = vmatpush1.msra.mxu0 0.0
    %1454 = vmatprep.subr.mxu0 0.0
    %1455 = vmatpush1.msra.mxu0 0.0
    %1456 = vmatprep.subr.mxu0 0.0
    %1457 = vmatpush1.msra.mxu0 0.0
    %1458 = vmatprep.mubr.f32.mxu0 0.0
    %1459 = vmatmul.mubr.f32.gmra.mrb[0].mxu0 %v1392
    %v1460 = vpop.f32.mrb[0].mxu0
    %v1461 = vadd.f32 0.0, %v1460
    %v1462 = vpop.f32.mrb[0].mxu0
    %1463 = vdwg.mxu0
    %1464 = vrot.lane.b32.xlu0 %v154, 40
    %v1465 = vpop.permute.xlu0 %1464
    %v1468 = vsel %vm192, %v1387, 0
    %1470 = vmatprep.subr.mxu0 0.0
    %1471 = vmatpush1.msra.mxu0 %v1465
    %1472 = vmatprep.subr.mxu0 0.0
    %1473 = vmatpush1.msra.mxu0 0.0
    %1474 = vmatprep.subr.mxu0 0.0
    %1475 = vmatpush1.msra.mxu0 0.0
    %1476 = vmatprep.subr.mxu0 0.0
    %1477 = vmatpush1.msra.mxu0 0.0
    %1478 = vmatprep.subr.mxu0 0.0
    %1479 = vmatpush1.msra.mxu0 0.0
    %1480 = vmatprep.subr.mxu0 0.0
    %1481 = vmatpush1.msra.mxu0 0.0
    %1482 = vmatprep.subr.mxu0 0.0
    %1483 = vmatpush1.msra.mxu0 0.0
    %1484 = vmatprep.subr.mxu0 0.0
    %1485 = vmatpush1.msra.mxu0 0.0
    %1486 = vmatprep.subr.mxu0 0.0
    %1487 = vmatpush1.msra.mxu0 0.0
    %1488 = vmatprep.subr.mxu0 0.0
    %1489 = vmatpush1.msra.mxu0 0.0
    %1490 = vmatprep.subr.mxu0 0.0
    %1491 = vmatpush1.msra.mxu0 0.0
    %1492 = vmatprep.subr.mxu0 0.0
    %1493 = vmatpush1.msra.mxu0 0.0
    %1494 = vmatprep.subr.mxu0 0.0
    %1495 = vmatpush1.msra.mxu0 0.0
    %1496 = vmatprep.subr.mxu0 0.0
    %1497 = vmatpush1.msra.mxu0 0.0
    %1498 = vmatprep.subr.mxu0 0.0
    %1499 = vmatpush1.msra.mxu0 0.0
    %1500 = vmatprep.subr.mxu0 0.0
    %1501 = vmatpush1.msra.mxu0 0.0
    %1502 = vmatprep.subr.mxu0 0.0
    %1503 = vmatpush1.msra.mxu0 0.0
    %1504 = vmatprep.subr.mxu0 0.0
    %1505 = vmatpush1.msra.mxu0 0.0
    %1506 = vmatprep.subr.mxu0 0.0
    %1507 = vmatpush1.msra.mxu0 0.0
    %1508 = vmatprep.subr.mxu0 0.0
    %1509 = vmatpush1.msra.mxu0 0.0
    %1510 = vmatprep.subr.mxu0 0.0
    %1511 = vmatpush1.msra.mxu0 0.0
    %1512 = vmatprep.subr.mxu0 0.0
    %1513 = vmatpush1.msra.mxu0 0.0
    %1514 = vmatprep.subr.mxu0 0.0
    %1515 = vmatpush1.msra.mxu0 0.0
    %1516 = vmatprep.subr.mxu0 0.0
    %1517 = vmatpush1.msra.mxu0 0.0
    %1518 = vmatprep.subr.mxu0 0.0
    %1519 = vmatpush1.msra.mxu0 0.0
    %1520 = vmatprep.subr.mxu0 0.0
    %1521 = vmatpush1.msra.mxu0 0.0
    %1522 = vmatprep.subr.mxu0 0.0
    %1523 = vmatpush1.msra.mxu0 0.0
    %1524 = vmatprep.subr.mxu0 0.0
    %1525 = vmatpush1.msra.mxu0 0.0
    %1526 = vmatprep.subr.mxu0 0.0
    %1527 = vmatpush1.msra.mxu0 0.0
    %1528 = vmatprep.subr.mxu0 0.0
    %1529 = vmatpush1.msra.mxu0 0.0
    %1530 = vmatprep.subr.mxu0 0.0
    %1531 = vmatpush1.msra.mxu0 0.0
    %1532 = vmatprep.subr.mxu0 0.0
    %1533 = vmatpush1.msra.mxu0 0.0
    %1534 = vmatprep.mubr.f32.mxu0 0.0
    %1535 = vmatmul.mubr.f32.gmra.mrb[0].mxu0 %v1468
    %v1536 = vpop.f32.mrb[0].mxu0
    %v1537 = vadd.f32 0.0, %v1536
    %v1538 = vpop.f32.mrb[0].mxu0
    %1539 = vdwg.mxu0
    %1540 = vset.pattern.permute.xlu0 99
    %1541 = vperm.xlu0 %1540, %v187
    %v1542 = vpop.permute.xlu0 %1541
    %1544 = vset.pattern.permute.xlu0 99
    %1545 = vperm.xlu0 %1544, %v188
    %v1546 = vpop.permute.xlu0 %1545
    %v1548 = vmul.f32 %v1461, %v1542
    %v1549 = vmul.f32 %v1537, %v1546
    %1552 = vrot.lane.b32.xlu0 %v868, 8
    %v1553 = vpop.permute.xlu0 %1552
    %1554 = vrot.lane.b32.xlu0 %v869, 8
    %v1555 = vpop.permute.xlu0 %1554
    %1560 = vrot.lane.b32.xlu0 %v1208, 16
    %v1561 = vpop.permute.xlu0 %1560
    %1562 = vrot.lane.b32.xlu0 %v1209, 16
    %v1563 = vpop.permute.xlu0 %1562
    %1568 = vrot.lane.b32.xlu0 %v1548, 24
    %v1569 = vpop.permute.xlu0 %1568
    %1570 = vrot.lane.b32.xlu0 %v1549, 24
    %v1571 = vpop.permute.xlu0 %1570
    %v1574 = vsel %vm192, %v528, %v1553
    %v1575 = vsel %vm192, %v529, %v1555
    %vm1576 = vcmask 130048
    %v1577 = vsel %vm1576, %v1574, %v1561
    %v1578 = vsel %vm1576, %v1575, %v1563
    %vm1579 = vcmask 195584
    %v1580 = vsel %vm1579, %v1577, %v1569
    %v1581 = vsel %vm1579, %v1578, %v1571
    %v1582 = vld [vmem:[#allocation7] sm:$0xff]
    %v1583 = vld [vmem:[#allocation7 + $0x8] sm:$0xff]
    %v1584 = vld [vmem:[#allocation7 + $0x10] sm:$0xff]
    %v1585 = vld [vmem:[#allocation7 + $0x18] sm:$0xff]
    %v1586 = vld [vmem:[%s4] sm:$0x1]
    %v1588 = vlaneseq
    %v1589 = vshrl.u32 %v1588, 7
    %v1590 = vsub.s32 0, %v1589
    %v1591 = vrot.slane %v1586, %v1590
    %v1594 = vsel %vm75, %v1580, 0
    %v1597 = vsel %vm75, %v1581, 0
    %1599 = vmatprep.subr.mxu0 0.0
    %1600 = vmatpush1.msra.mxu0 %v1582
    %1601 = vmatprep.subr.mxu0 0.0
    %1602 = vmatpush1.msra.mxu0 %v1583
    %1603 = vmatprep.subr.mxu0 0.0
    %1604 = vmatpush1.msra.mxu0 %v1584
    %1605 = vmatprep.subr.mxu0 0.0
    %1606 = vmatpush1.msra.mxu0 %v1585
    %1607 = vmatprep.subr.mxu0 0.0
    %1608 = vmatpush1.msra.mxu0 0.0
    %1609 = vmatprep.subr.mxu0 0.0
    %1610 = vmatpush1.msra.mxu0 0.0
    %1611 = vmatprep.subr.mxu0 0.0
    %1612 = vmatpush1.msra.mxu0 0.0
    %1613 = vmatprep.subr.mxu0 0.0
    %1614 = vmatpush1.msra.mxu0 0.0
    %1615 = vmatprep.subr.mxu0 0.0
    %1616 = vmatpush1.msra.mxu0 0.0
    %1617 = vmatprep.subr.mxu0 0.0
    %1618 = vmatpush1.msra.mxu0 0.0
    %1619 = vmatprep.subr.mxu0 0.0
    %1620 = vmatpush1.msra.mxu0 0.0
    %1621 = vmatprep.subr.mxu0 0.0
    %1622 = vmatpush1.msra.mxu0 0.0
    %1623 = vmatprep.subr.mxu0 0.0
    %1624 = vmatpush1.msra.mxu0 0.0
    %1625 = vmatprep.subr.mxu0 0.0
    %1626 = vmatpush1.msra.mxu0 0.0
    %1627 = vmatprep.subr.mxu0 0.0
    %1628 = vmatpush1.msra.mxu0 0.0
    %1629 = vmatprep.subr.mxu0 0.0
    %1630 = vmatpush1.msra.mxu0 0.0
    %1631 = vmatprep.subr.mxu0 0.0
    %1632 = vmatpush1.msra.mxu0 0.0
    %1633 = vmatprep.subr.mxu0 0.0
    %1634 = vmatpush1.msra.mxu0 0.0
    %1635 = vmatprep.subr.mxu0 0.0
    %1636 = vmatpush1.msra.mxu0 0.0
    %1637 = vmatprep.subr.mxu0 0.0
    %1638 = vmatpush1.msra.mxu0 0.0
    %1639 = vmatprep.subr.mxu0 0.0
    %1640 = vmatpush1.msra.mxu0 0.0
    %1641 = vmatprep.subr.mxu0 0.0
    %1642 = vmatpush1.msra.mxu0 0.0
    %1643 = vmatprep.subr.mxu0 0.0
    %1644 = vmatpush1.msra.mxu0 0.0
    %1645 = vmatprep.subr.mxu0 0.0
    %1646 = vmatpush1.msra.mxu0 0.0
    %1647 = vmatprep.subr.mxu0 0.0
    %1648 = vmatpush1.msra.mxu0 0.0
    %1649 = vmatprep.subr.mxu0 0.0
    %1650 = vmatpush1.msra.mxu0 0.0
    %1651 = vmatprep.subr.mxu0 0.0
    %1652 = vmatpush1.msra.mxu0 0.0
    %1653 = vmatprep.subr.mxu0 0.0
    %1654 = vmatpush1.msra.mxu0 0.0
    %1655 = vmatprep.subr.mxu0 0.0
    %1656 = vmatpush1.msra.mxu0 0.0
    %1657 = vmatprep.subr.mxu0 0.0
    %1658 = vmatpush1.msra.mxu0 0.0
    %1659 = vmatprep.subr.mxu0 0.0
    %1660 = vmatpush1.msra.mxu0 0.0
    %1661 = vmatprep.subr.mxu0 0.0
    %1662 = vmatpush1.msra.mxu0 0.0
    %1663 = vmatprep.mubr.f32.mxu0 0.0
    %1664 = vmatmul.mubr.f32.gmra.mrb[0].mxu0 %v1594
    %v1665 = vpop.f32.mrb[0].mxu0
    %v1666 = vadd.f32 %v1591, %v1665
    %v1667 = vpop.f32.mrb[0].mxu0
    %1668 = vmatprep.mubr.f32.mxu0 0.0
    %1669 = vmatmul.mubr.f32.gmra.mrb[0].mxu0 %v1597
    %v1670 = vpop.f32.mrb[0].mxu0
    %v1671 = vadd.f32 %v1591, %v1670
    %v1672 = vpop.f32.mrb[0].mxu0
    %1673 = vdwg.mxu0
    %1674 = vst.msk [vmem:[#allocation8] sm:$0xff] %vm75, %v1666
    %1675 = vst.msk [vmem:[#allocation8 + $0x8] sm:$0xff] %vm75, %v1671
    // Predicated region
    $region34: #{moe_attention.1} parent=1 // pred_check
      _
    $region35: #{moe_attention.1} parent=1 // pred_check_branch
      %1677 = sbr.rel (0) target = $region37
    $region36: #{moe_attention.1} parent=1 // pred_region
      %s1679 = ssub.s32 256, 256
      %1680 = vsyncadd [#allocation4], %s1679
      %s1681 = sshll.u32 [#allocation8], 4
      %s1682 = int_to_ptr.vmem [resolvable:$true] %s1681
      %1687 = dma.vmem_to_hbm [thread:$0]  %s1682, 256, %s5, [#allocation4], 128, 128, 8
    $region37: #{moe_attention.1} parent=1 // pred_fallthru
      _
    // Predicated region
    $region38: #{moe_attention.1} parent=1 // pred_check
      _
    $region39: #{moe_attention.1} parent=1 // pred_check_branch
      %1689 = sbr.rel (0) target = $region41
    $region40: #{moe_attention.1} parent=1 // pred_region
      %1690 = dma.done [#allocation4], 256
    $region41: #{moe_attention.1} parent=1 // pred_fallthru
      _
    %1691 = vsyncpa [#allocation3], 1
    %1692 = vsyncpa [#allocation6], 1
    %1693 = vsyncpa [#allocation4], 1

</llo_original>
